<compile_context>
chip_gen: v7x
topology: tpu7x:2x2x1
jax: 0.10.0
libtpu: 0.0.40
codegen_flags: <defaults>
</compile_context>

<pallas_src>
import math

import jax
import jax.numpy as jnp
from jax import lax
from jax.experimental import pallas as pl
from jax.experimental.pallas import tpu as pltpu

TB = 8        # batch-tile (sublane) size
LANE = 128    # lane width


def _round_up(x, m):
    return ((x + m - 1) // m) * m


def _vmem_capacity_bytes():
    try:
        info = pltpu.get_tpu_info()
        cap = getattr(info, "vmem_capacity_bytes", None)
        if cap:
            return int(cap)
    except Exception:
        pass
    return 64 * 1024 * 1024        # conservative default: v7x per-core VMEM


# --------------------------------------------------------------------------
# Kernel 1: SentenceEncoder forward (resident fused table).
#   grid = (N // TB,).  For grid step i the output block holds TB batch rows.
#   Token ids are scalar-prefetched into SMEM; for every sequence position the
#   kernel gathers TB fused-table rows (dynamic sublane reads of the resident
#   VMEM table) into an [TB, Hp] scratch and takes a dense running max.
# --------------------------------------------------------------------------
def _make_encoder_kernel(seq_len, tb):
    def kernel(tok_ref, table_ref, out_ref, gbuf_ref):
        # tok_ref   : SMEM [N*S] int32 (scalar prefetch)
        # table_ref : VMEM [Vpad, Hp] fused table (bias baked in), resident
        # out_ref   : VMEM [TB, Hp] encodings for this batch tile
        # gbuf_ref  : VMEM [TB, Hp] sublane-dense gather scratch
        b_base = pl.program_id(0) * tb

        def gather(s):
            for b in range(tb):                       # static -> static stores
                tok = tok_ref[(b_base + b) * seq_len + s]
                gbuf_ref[pl.ds(b, 1), :] = table_ref[pl.ds(tok, 1), :]

        gather(0)
        out_ref[...] = gbuf_ref[...]

        def seq_body(s, carry):
            gather(s)
            out_ref[...] = jnp.maximum(out_ref[...], gbuf_ref[...])
            return carry

        lax.fori_loop(1, seq_len, seq_body, 0, unroll=(seq_len <= 16))

    return kernel


def encode_padded(tokens, fused_table, vmem_limit_bytes):
    """tokens: [N, S] int32 with N % TB == 0 (padding rows use token id 0).
    fused_table: [Vpad, Hp] f32 (= emb @ W.T + b, padded).
    Returns [N, Hp] f32 encodings (lanes >= hidden_size are the bias padding,
    sliced off by the caller)."""
    N, S = tokens.shape
    assert N % TB == 0
    Vpad, Hp = fused_table.shape
    tok_flat = tokens.reshape(-1).astype(jnp.int32)   # scalar prefetch -> SMEM

    return pl.pallas_call(
        _make_encoder_kernel(S, TB),
        out_shape=jax.ShapeDtypeStruct((N, Hp), jnp.float32),
        grid_spec=pltpu.PrefetchScalarGridSpec(
            num_scalar_prefetch=1,
            grid=(N // TB,),
            in_specs=[
                # constant block index -> table stays resident in VMEM
                pl.BlockSpec((Vpad, Hp), lambda i, tok: (0, 0)),
            ],
            out_specs=pl.BlockSpec((TB, Hp), lambda i, tok: (i, 0)),
            scratch_shapes=[pltpu.VMEM((TB, Hp), jnp.float32)],
        ),
        compiler_params=pltpu.CompilerParams(
            dimension_semantics=("parallel",),
            vmem_limit_bytes=vmem_limit_bytes),
    )(tok_flat, fused_table)


# --------------------------------------------------------------------------
# Loss epilogues.  The merged encodings are laid out [k, Bpad, Hp] with Bpad a
# multiple of 8, so per-sentence views are static leading-axis indices
# (tile-aligned, no relayout).  Padded rows are masked out of the reductions.
# --------------------------------------------------------------------------
def _l2_normalize(x):
    # torch F.normalize(eps=1e-12):  x / max(||x||, 1e-12) == x * rsqrt(max(n2, 1e-24))
    n2 = jnp.sum(x * x, axis=-1, keepdims=True)
    return x * lax.rsqrt(jnp.maximum(n2, 1e-24))


def _cosine_distance_kernel(enc_ref, out_ref):
    n1 = _l2_normalize(enc_ref[0])
    n2 = _l2_normalize(enc_ref[1])
    out_ref[...] = 1.0 - jnp.sum(n1 * n2, axis=-1, keepdims=True)


def _make_triplet_kernel(margin):
    def kernel(enc_ref, mask_ref, out_ref):
        a = _l2_normalize(enc_ref[0])
        p = _l2_normalize(enc_ref[1])
        n = _l2_normalize(enc_ref[2])
        ap = 1.0 - jnp.sum(a * p, axis=-1, keepdims=True)
        an = 1.0 - jnp.sum(a * n, axis=-1, keepdims=True)
        diff = ap - an + margin
        m = mask_ref[...] * (diff > 0.0).astype(jnp.float32)
        # mean over entries with diff > 0 (NaN for the empty set, like torch.mean)
        out_ref[0, 0] = jnp.sum(diff * m) / jnp.sum(m)
    return kernel


def _cos_emb_loss_kernel(enc_ref, mask_ref, tgt_ref, out_ref):
    n1 = _l2_normalize(enc_ref[0])
    n2 = _l2_normalize(enc_ref[1])
    cos = jnp.sum(n1 * n2, axis=-1, keepdims=True)            # [Bpad, 1]
    per = jnp.where(tgt_ref[...] > 0.0, 1.0 - cos, jnp.maximum(cos, 0.0))
    m = mask_ref[...]
    out_ref[0, 0] = jnp.sum(per * m) / jnp.sum(m)


def cosine_distance_call(enc, B):
    k, Bpad, Hp = enc.shape
    out = pl.pallas_call(
        _cosine_distance_kernel,
        out_shape=jax.ShapeDtypeStruct((Bpad, 1), jnp.float32),
        grid=(1,),
        in_specs=[pl.BlockSpec((k, Bpad, Hp), lambda i: (0, 0, 0))],
        out_specs=pl.BlockSpec((Bpad, 1), lambda i: (0, 0)),
    )(enc)
    return out[:B, 0]


def triplet_loss_call(enc, mask, margin):
    k, Bpad, Hp = enc.shape
    out = pl.pallas_call(
        _make_triplet_kernel(margin),
        out_shape=jax.ShapeDtypeStruct((1, 1), jnp.float32),
        grid=(1,),
        in_specs=[pl.BlockSpec((k, Bpad, Hp), lambda i: (0, 0, 0)),
                  pl.BlockSpec((Bpad, 1), lambda i: (0, 0))],
        out_specs=pl.BlockSpec((1, 1), lambda i: (0, 0)),
    )(enc, mask)
    return out.reshape(())


def cos_emb_loss_call(enc, mask, tgt):
    k, Bpad, Hp = enc.shape
    out = pl.pallas_call(
        _cos_emb_loss_kernel,
        out_shape=jax.ShapeDtypeStruct((1, 1), jnp.float32),
        grid=(1,),
        in_specs=[pl.BlockSpec((k, Bpad, Hp), lambda i: (0, 0, 0)),
                  pl.BlockSpec((Bpad, 1), lambda i: (0, 0)),
                  pl.BlockSpec((Bpad, 1), lambda i: (0, 0))],
        out_specs=pl.BlockSpec((1, 1), lambda i: (0, 0)),
    )(enc, mask, tgt)
    return out.reshape(())


# --------------------------------------------------------------------------
# Module-equivalent wrapper with deterministic parameter init.
# --------------------------------------------------------------------------
class SiameseNetwork:
    def __init__(self, config, key):
        H = config["hidden_size"]
        V = config["vocab_size"] + 1
        self.hidden_size = H
        Hp = _round_up(max(H, LANE), LANE)       # lane-dense hidden dim
        Vpad = _round_up(V, TB)                  # sublane-aligned vocab rows
        self.hidden_pad = Hp

        k_emb, k_w, k_b = jax.random.split(key, 3)
        emb = jax.random.normal(k_emb, (V, H), dtype=jnp.float32)
        emb = emb.at[0].set(0.0)                                   # padding_idx=0
        bound = 1.0 / math.sqrt(H)
        W = jax.random.uniform(k_w, (H, H), jnp.float32, -bound, bound)  # [out, in]
        b = jax.random.uniform(k_b, (H,), jnp.float32, -bound, bound)
        self.table, self.W, self.b = emb, W, b        # raw params (for reference)

        # Fuse embedding + linear + bias once (exact algebra), pad to (Vpad, Hp).
        fused = jnp.matmul(emb, W.T, precision=jax.lax.Precision.HIGHEST) + b
        self.fused_table = (jnp.zeros((Vpad, Hp), jnp.float32)
                            .at[:V, :H].set(fused))

        # Resident-table gating + explicit scoped-VMEM limit.
        vmem_cap = _vmem_capacity_bytes()
        budget = (vmem_cap * 3) // 4
        table_bytes = Vpad * Hp * 4
        need = 2 * table_bytes + 4 * TB * Hp * 4 + (2 << 20)
        if need > budget:
            # TODO(synk): streamed, double-buffered HBM-gather encoder path for
            # fused tables that exceed the per-core VMEM budget.
            raise NotImplementedError(
                "fused embedding table too large for the resident-VMEM encoder")
        self._vmem_limit = int(min(max(need, 32 * 1024 * 1024), budget))

    # ---- helpers --------------------------------------------------------
    def _pad_batch(self, tokens):
        B, S = tokens.shape
        Bpad = _round_up(B, TB)
        if Bpad != B:
            tokens = jnp.concatenate(
                [tokens, jnp.zeros((Bpad - B, S), tokens.dtype)], axis=0)
        return tokens, Bpad

    def _encode_sentences(self, sentences):
        """Encode k sentences (each [B, S]) in ONE pallas_call.
        Returns ([k, Bpad, Hp] encodings, Bpad)."""
        padded, bpads = zip(*(self._pad_batch(s) for s in sentences))
        Bpad = bpads[0]
        merged = jnp.concatenate(padded, axis=0)               # [k*Bpad, S]
        enc = encode_padded(merged, self.fused_table, self._vmem_limit)
        return enc.reshape(len(sentences), Bpad, self.hidden_pad), Bpad

    @staticmethod
    def _row_mask(B, Bpad):
        return (jnp.arange(Bpad) < B).astype(jnp.float32).reshape(Bpad, 1)

    # ---- public API (SentenceEncoder.forward equivalent) ----------------
    def encode(self, tokens):
        enc, _ = self._encode_sentences([tokens])
        return enc[0, :tokens.shape[0], :self.hidden_size]

    def forward(self, sentence1, sentence2=None, sentence3=None, target=None):
        B = sentence1.shape[0]
        if sentence2 is not None and sentence3 is not None:
            enc, Bpad = self._encode_sentences([sentence1, sentence2, sentence3])
            return triplet_loss_call(enc, self._row_mask(B, Bpad), margin=0.1)
        elif sentence2 is not None:
            enc, Bpad = self._encode_sentences([sentence1, sentence2])
            if target is not None:
                tgt = jnp.zeros((Bpad, 1), jnp.float32).at[:B, 0].set(
                    target.reshape(-1).astype(jnp.float32))
                return cos_emb_loss_call(enc, self._row_mask(B, Bpad), tgt)
            return cosine_distance_call(enc, B)
        else:
            return self.encode(sentence1)


# --------------------------------------------------------------------------
# Pure-JAX reference for verification.
# --------------------------------------------------------------------------
def _encode_ref(tokens, table, W, b):
    emb = table[tokens]                                            # [B, S, H]
    y = jnp.matmul(emb, W.T, precision=jax.lax.Precision.HIGHEST) + b
    return jnp.max(y, axis=1)                                      # [B, H]


def _normalize_ref(x):
    return x / jnp.maximum(jnp.linalg.norm(x, axis=-1, keepdims=True), 1e-12)


if __name__ == "__main__":
    config = {"hidden_size": 32, "vocab_size": 31}    # V = vocab_size + 1 = 32
    B, S = 2, 8

    key = jax.random.PRNGKey(0)
    k_params, k_s1, k_s2, k_s3 = jax.random.split(key, 4)
    net = SiameseNetwork(config, k_params)

    V = config["vocab_size"] + 1
    s1 = jax.random.randint(k_s1, (B, S), 0, V, dtype=jnp.int32)
    s2 = jax.random.randint(k_s2, (B, S), 0, V, dtype=jnp.int32)
    s3 = jax.random.randint(k_s3, (B, S), 0, V, dtype=jnp.int32)
    target = jnp.array([1.0, -1.0], dtype=jnp.float32)

    # ---- single-sentence branch (encoder only) ----
    vec = jax.block_until_ready(net.forward(s1))
    vec_ref = _encode_ref(s1, net.table, net.W, net.b)
    assert vec.shape == (B, config["hidden_size"])
    assert jnp.allclose(vec, vec_ref, atol=1e-4, rtol=1e-4)

    # ---- pair branch: cosine distance ----
    dist = jax.block_until_ready(net.forward(s1, s2))
    v1r = _encode_ref(s1, net.table, net.W, net.b)
    v2r = _encode_ref(s2, net.table, net.W, net.b)
    cos_ref = jnp.sum(_normalize_ref(v1r) * _normalize_ref(v2r), axis=-1)
    assert dist.shape == (B,)
    assert jnp.allclose(dist, 1.0 - cos_ref, atol=1e-4, rtol=1e-4)

    # ---- pair branch with target: CosineEmbeddingLoss (margin=0, mean) ----
    emb_loss = jax.block_until_ready(net.forward(s1, s2, target=target))
    per_ref = jnp.where(target > 0.0, 1.0 - cos_ref, jnp.maximum(cos_ref, 0.0))
    assert emb_loss.shape == ()
    assert jnp.allclose(emb_loss, jnp.mean(per_ref), atol=1e-4, rtol=1e-4)

    # ---- triplet branch ----
    trip = jax.block_until_ready(net.forward(s1, s2, s3))
    v3r = _encode_ref(s3, net.table, net.W, net.b)
    ap = 1.0 - jnp.sum(_normalize_ref(v1r) * _normalize_ref(v2r), axis=-1)
    an = 1.0 - jnp.sum(_normalize_ref(v1r) * _normalize_ref(v3r), axis=-1)
    diff = ap - an + 0.1
    mask = (diff > 0.0).astype(jnp.float32)
    trip_ref = jnp.sum(diff * mask) / jnp.sum(mask)   # NaN iff no positives
    assert trip.shape == ()
    assert jnp.allclose(trip, trip_ref, atol=1e-4, rtol=1e-4, equal_nan=True)

    print("KERNEL_OK")
</pallas_src>

<mosaic_0001>
module attributes {stable_mosaic.version = 11 : i64} {
  func.func @kernel(%arg0: i32, %arg1: memref<64xi32, #tpu.memory_space<smem>>, %arg2: memref<32x128xf32, #tpu.memory_space<vmem>>, %arg3: memref<8x128xf32, #tpu.memory_space<vmem>>, %arg4: memref<8x128xf32, #tpu.memory_space<vmem>>) attributes {dimension_semantics = [#tpu.dimension_semantics<parallel>], iteration_bounds = array<i64: 1>, scalar_prefetch = 1 : i64, scratch_operands = 1 : i64, tpu.core_type = #tpu.core_type<tc>, window_params = [{pipeline_mode = #tpu.pipeline_mode<synchronous>, transform_indices = @transform_0, window_bounds = array<i64: 32, 128>}, {transform_indices = @transform_1, window_bounds = array<i64: 8, 128>}]} {
    %c8_i32 = arith.constant 8 : i32
    %0 = arith.muli %arg0, %c8_i32 : i32
    %c0_i32 = arith.constant 0 : i32
    %1 = arith.addi %0, %c0_i32 : i32
    %c8_i32_0 = arith.constant 8 : i32
    %2 = arith.muli %1, %c8_i32_0 : i32
    %c0_i32_1 = arith.constant 0 : i32
    %3 = arith.addi %2, %c0_i32_1 : i32
    %4 = arith.index_cast %3 : i32 to index
    %5 = memref.load %arg1[%4] : memref<64xi32, #tpu.memory_space<smem>>
    %6 = arith.index_cast %5 : i32 to index
    %c0 = arith.constant 0 : index
    %7 = vector.load %arg2[%6, %c0] : memref<32x128xf32, #tpu.memory_space<vmem>>, vector<1x128xf32>
    %c0_2 = arith.constant 0 : index
    %c0_3 = arith.constant 0 : index
    %8 = vector.load %arg4[%c0_2, %c0_3] : memref<8x128xf32, #tpu.memory_space<vmem>>, vector<1x128xf32>
    tpu.vector_store %arg4[%c0_2, %c0_3], %7 {strides = array<i32>} : memref<8x128xf32, #tpu.memory_space<vmem>>, vector<1x128xf32>,
    %c1_i32 = arith.constant 1 : i32
    %9 = arith.addi %0, %c1_i32 : i32
    %c8_i32_4 = arith.constant 8 : i32
    %10 = arith.muli %9, %c8_i32_4 : i32
    %c0_i32_5 = arith.constant 0 : i32
    %11 = arith.addi %10, %c0_i32_5 : i32
    %12 = arith.index_cast %11 : i32 to index
    %13 = memref.load %arg1[%12] : memref<64xi32, #tpu.memory_space<smem>>
    %14 = arith.index_cast %13 : i32 to index
    %c0_6 = arith.constant 0 : index
    %15 = vector.load %arg2[%14, %c0_6] : memref<32x128xf32, #tpu.memory_space<vmem>>, vector<1x128xf32>
    %c1 = arith.constant 1 : index
    %c0_7 = arith.constant 0 : index
    %16 = vector.load %arg4[%c1, %c0_7] : memref<8x128xf32, #tpu.memory_space<vmem>>, vector<1x128xf32>
    tpu.vector_store %arg4[%c1, %c0_7], %15 {strides = array<i32>} : memref<8x128xf32, #tpu.memory_space<vmem>>, vector<1x128xf32>,
    %c2_i32 = arith.constant 2 : i32
    %17 = arith.addi %0, %c2_i32 : i32
    %c8_i32_8 = arith.constant 8 : i32
    %18 = arith.muli %17, %c8_i32_8 : i32
    %c0_i32_9 = arith.constant 0 : i32
    %19 = arith.addi %18, %c0_i32_9 : i32
    %20 = arith.index_cast %19 : i32 to index
    %21 = memref.load %arg1[%20] : memref<64xi32, #tpu.memory_space<smem>>
    %22 = arith.index_cast %21 : i32 to index
    %c0_10 = arith.constant 0 : index
    %23 = vector.load %arg2[%22, %c0_10] : memref<32x128xf32, #tpu.memory_space<vmem>>, vector<1x128xf32>
    %c2 = arith.constant 2 : index
    %c0_11 = arith.constant 0 : index
    %24 = vector.load %arg4[%c2, %c0_11] : memref<8x128xf32, #tpu.memory_space<vmem>>, vector<1x128xf32>
    tpu.vector_store %arg4[%c2, %c0_11], %23 {strides = array<i32>} : memref<8x128xf32, #tpu.memory_space<vmem>>, vector<1x128xf32>,
    %c3_i32 = arith.constant 3 : i32
    %25 = arith.addi %0, %c3_i32 : i32
    %c8_i32_12 = arith.constant 8 : i32
    %26 = arith.muli %25, %c8_i32_12 : i32
    %c0_i32_13 = arith.constant 0 : i32
    %27 = arith.addi %26, %c0_i32_13 : i32
    %28 = arith.index_cast %27 : i32 to index
    %29 = memref.load %arg1[%28] : memref<64xi32, #tpu.memory_space<smem>>
    %30 = arith.index_cast %29 : i32 to index
    %c0_14 = arith.constant 0 : index
    %31 = vector.load %arg2[%30, %c0_14] : memref<32x128xf32, #tpu.memory_space<vmem>>, vector<1x128xf32>
    %c3 = arith.constant 3 : index
    %c0_15 = arith.constant 0 : index
    %32 = vector.load %arg4[%c3, %c0_15] : memref<8x128xf32, #tpu.memory_space<vmem>>, vector<1x128xf32>
    tpu.vector_store %arg4[%c3, %c0_15], %31 {strides = array<i32>} : memref<8x128xf32, #tpu.memory_space<vmem>>, vector<1x128xf32>,
    %c4_i32 = arith.constant 4 : i32
    %33 = arith.addi %0, %c4_i32 : i32
    %c8_i32_16 = arith.constant 8 : i32
    %34 = arith.muli %33, %c8_i32_16 : i32
    %c0_i32_17 = arith.constant 0 : i32
    %35 = arith.addi %34, %c0_i32_17 : i32
    %36 = arith.index_cast %35 : i32 to index
    %37 = memref.load %arg1[%36] : memref<64xi32, #tpu.memory_space<smem>>
    %38 = arith.index_cast %37 : i32 to index
    %c0_18 = arith.constant 0 : index
    %39 = vector.load %arg2[%38, %c0_18] : memref<32x128xf32, #tpu.memory_space<vmem>>, vector<1x128xf32>
    %c4 = arith.constant 4 : index
    %c0_19 = arith.constant 0 : index
    %40 = vector.load %arg4[%c4, %c0_19] : memref<8x128xf32, #tpu.memory_space<vmem>>, vector<1x128xf32>
    tpu.vector_store %arg4[%c4, %c0_19], %39 {strides = array<i32>} : memref<8x128xf32, #tpu.memory_space<vmem>>, vector<1x128xf32>,
    %c5_i32 = arith.constant 5 : i32
    %41 = arith.addi %0, %c5_i32 : i32
    %c8_i32_20 = arith.constant 8 : i32
    %42 = arith.muli %41, %c8_i32_20 : i32
    %c0_i32_21 = arith.constant 0 : i32
    %43 = arith.addi %42, %c0_i32_21 : i32
    %44 = arith.index_cast %43 : i32 to index
    %45 = memref.load %arg1[%44] : memref<64xi32, #tpu.memory_space<smem>>
    %46 = arith.index_cast %45 : i32 to index
    %c0_22 = arith.constant 0 : index
    %47 = vector.load %arg2[%46, %c0_22] : memref<32x128xf32, #tpu.memory_space<vmem>>, vector<1x128xf32>
    %c5 = arith.constant 5 : index
    %c0_23 = arith.constant 0 : index
    %48 = vector.load %arg4[%c5, %c0_23] : memref<8x128xf32, #tpu.memory_space<vmem>>, vector<1x128xf32>
    tpu.vector_store %arg4[%c5, %c0_23], %47 {strides = array<i32>} : memref<8x128xf32, #tpu.memory_space<vmem>>, vector<1x128xf32>,
    %c6_i32 = arith.constant 6 : i32
    %49 = arith.addi %0, %c6_i32 : i32
    %c8_i32_24 = arith.constant 8 : i32
    %50 = arith.muli %49, %c8_i32_24 : i32
    %c0_i32_25 = arith.constant 0 : i32
    %51 = arith.addi %50, %c0_i32_25 : i32
    %52 = arith.index_cast %51 : i32 to index
    %53 = memref.load %arg1[%52] : memref<64xi32, #tpu.memory_space<smem>>
    %54 = arith.index_cast %53 : i32 to index
    %c0_26 = arith.constant 0 : index
    %55 = vector.load %arg2[%54, %c0_26] : memref<32x128xf32, #tpu.memory_space<vmem>>, vector<1x128xf32>
    %c6 = arith.constant 6 : index
    %c0_27 = arith.constant 0 : index
    %56 = vector.load %arg4[%c6, %c0_27] : memref<8x128xf32, #tpu.memory_space<vmem>>, vector<1x128xf32>
    tpu.vector_store %arg4[%c6, %c0_27], %55 {strides = array<i32>} : memref<8x128xf32, #tpu.memory_space<vmem>>, vector<1x128xf32>,
    %c7_i32 = arith.constant 7 : i32
    %57 = arith.addi %0, %c7_i32 : i32
    %c8_i32_28 = arith.constant 8 : i32
    %58 = arith.muli %57, %c8_i32_28 : i32
    %c0_i32_29 = arith.constant 0 : i32
    %59 = arith.addi %58, %c0_i32_29 : i32
    %60 = arith.index_cast %59 : i32 to index
    %61 = memref.load %arg1[%60] : memref<64xi32, #tpu.memory_space<smem>>
    %62 = arith.index_cast %61 : i32 to index
    %c0_30 = arith.constant 0 : index
    %63 = vector.load %arg2[%62, %c0_30] : memref<32x128xf32, #tpu.memory_space<vmem>>, vector<1x128xf32>
    %c7 = arith.constant 7 : index
    %c0_31 = arith.constant 0 : index
    %64 = vector.load %arg4[%c7, %c0_31] : memref<8x128xf32, #tpu.memory_space<vmem>>, vector<1x128xf32>
    tpu.vector_store %arg4[%c7, %c0_31], %63 {strides = array<i32>} : memref<8x128xf32, #tpu.memory_space<vmem>>, vector<1x128xf32>,
    %c0_32 = arith.constant 0 : index
    %c0_33 = arith.constant 0 : index
    %65 = vector.load %arg4[%c0_32, %c0_33] : memref<8x128xf32, #tpu.memory_space<vmem>>, vector<8x128xf32>
    %c0_34 = arith.constant 0 : index
    %c0_35 = arith.constant 0 : index
    %66 = vector.load %arg3[%c0_34, %c0_35] : memref<8x128xf32, #tpu.memory_space<vmem>>, vector<8x128xf32>
    tpu.vector_store %arg3[%c0_34, %c0_35], %65 {strides = array<i32>} : memref<8x128xf32, #tpu.memory_space<vmem>>, vector<8x128xf32>,
    %c1_i32_36 = arith.constant 1 : i32
    %c0_i32_37 = arith.constant 0 : i32
    %67 = arith.addi %0, %c0_i32_37 : i32
    %c8_i32_38 = arith.constant 8 : i32
    %68 = arith.muli %67, %c8_i32_38 : i32
    %69 = arith.addi %68, %c1_i32_36 : i32
    %70 = arith.index_cast %69 : i32 to index
    %71 = memref.load %arg1[%70] : memref<64xi32, #tpu.memory_space<smem>>
    %72 = arith.index_cast %71 : i32 to index
    %c0_39 = arith.constant 0 : index
    %73 = vector.load %arg2[%72, %c0_39] : memref<32x128xf32, #tpu.memory_space<vmem>>, vector<1x128xf32>
    %c0_40 = arith.constant 0 : index
    %c0_41 = arith.constant 0 : index
    %74 = vector.load %arg4[%c0_40, %c0_41] : memref<8x128xf32, #tpu.memory_space<vmem>>, vector<1x128xf32>
    tpu.vector_store %arg4[%c0_40, %c0_41], %73 {strides = array<i32>} : memref<8x128xf32, #tpu.memory_space<vmem>>, vector<1x128xf32>,
    %c1_i32_42 = arith.constant 1 : i32
    %75 = arith.addi %0, %c1_i32_42 : i32
    %c8_i32_43 = arith.constant 8 : i32
    %76 = arith.muli %75, %c8_i32_43 : i32
    %77 = arith.addi %76, %c1_i32_36 : i32
    %78 = arith.index_cast %77 : i32 to index
    %79 = memref.load %arg1[%78] : memref<64xi32, #tpu.memory_space<smem>>
    %80 = arith.index_cast %79 : i32 to index
    %c0_44 = arith.constant 0 : index
    %81 = vector.load %arg2[%80, %c0_44] : memref<32x128xf32, #tpu.memory_space<vmem>>, vector<1x128xf32>
    %c1_45 = arith.constant 1 : index
    %c0_46 = arith.constant 0 : index
    %82 = vector.load %arg4[%c1_45, %c0_46] : memref<8x128xf32, #tpu.memory_space<vmem>>, vector<1x128xf32>
    tpu.vector_store %arg4[%c1_45, %c0_46], %81 {strides = array<i32>} : memref<8x128xf32, #tpu.memory_space<vmem>>, vector<1x128xf32>,
    %c2_i32_47 = arith.constant 2 : i32
    %83 = arith.addi %0, %c2_i32_47 : i32
    %c8_i32_48 = arith.constant 8 : i32
    %84 = arith.muli %83, %c8_i32_48 : i32
    %85 = arith.addi %84, %c1_i32_36 : i32
    %86 = arith.index_cast %85 : i32 to index
    %87 = memref.load %arg1[%86] : memref<64xi32, #tpu.memory_space<smem>>
    %88 = arith.index_cast %87 : i32 to index
    %c0_49 = arith.constant 0 : index
    %89 = vector.load %arg2[%88, %c0_49] : memref<32x128xf32, #tpu.memory_space<vmem>>, vector<1x128xf32>
    %c2_50 = arith.constant 2 : index
    %c0_51 = arith.constant 0 : index
    %90 = vector.load %arg4[%c2_50, %c0_51] : memref<8x128xf32, #tpu.memory_space<vmem>>, vector<1x128xf32>
    tpu.vector_store %arg4[%c2_50, %c0_51], %89 {strides = array<i32>} : memref<8x128xf32, #tpu.memory_space<vmem>>, vector<1x128xf32>,
    %c3_i32_52 = arith.constant 3 : i32
    %91 = arith.addi %0, %c3_i32_52 : i32
    %c8_i32_53 = arith.constant 8 : i32
    %92 = arith.muli %91, %c8_i32_53 : i32
    %93 = arith.addi %92, %c1_i32_36 : i32
    %94 = arith.index_cast %93 : i32 to index
    %95 = memref.load %arg1[%94] : memref<64xi32, #tpu.memory_space<smem>>
    %96 = arith.index_cast %95 : i32 to index
    %c0_54 = arith.constant 0 : index
    %97 = vector.load %arg2[%96, %c0_54] : memref<32x128xf32, #tpu.memory_space<vmem>>, vector<1x128xf32>
    %c3_55 = arith.constant 3 : index
    %c0_56 = arith.constant 0 : index
    %98 = vector.load %arg4[%c3_55, %c0_56] : memref<8x128xf32, #tpu.memory_space<vmem>>, vector<1x128xf32>
    tpu.vector_store %arg4[%c3_55, %c0_56], %97 {strides = array<i32>} : memref<8x128xf32, #tpu.memory_space<vmem>>, vector<1x128xf32>,
    %c4_i32_57 = arith.constant 4 : i32
    %99 = arith.addi %0, %c4_i32_57 : i32
    %c8_i32_58 = arith.constant 8 : i32
    %100 = arith.muli %99, %c8_i32_58 : i32
    %101 = arith.addi %100, %c1_i32_36 : i32
    %102 = arith.index_cast %101 : i32 to index
    %103 = memref.load %arg1[%102] : memref<64xi32, #tpu.memory_space<smem>>
    %104 = arith.index_cast %103 : i32 to index
    %c0_59 = arith.constant 0 : index
    %105 = vector.load %arg2[%104, %c0_59] : memref<32x128xf32, #tpu.memory_space<vmem>>, vector<1x128xf32>
    %c4_60 = arith.constant 4 : index
    %c0_61 = arith.constant 0 : index
    %106 = vector.load %arg4[%c4_60, %c0_61] : memref<8x128xf32, #tpu.memory_space<vmem>>, vector<1x128xf32>
    tpu.vector_store %arg4[%c4_60, %c0_61], %105 {strides = array<i32>} : memref<8x128xf32, #tpu.memory_space<vmem>>, vector<1x128xf32>,
    %c5_i32_62 = arith.constant 5 : i32
    %107 = arith.addi %0, %c5_i32_62 : i32
    %c8_i32_63 = arith.constant 8 : i32
    %108 = arith.muli %107, %c8_i32_63 : i32
    %109 = arith.addi %108, %c1_i32_36 : i32
    %110 = arith.index_cast %109 : i32 to index
    %111 = memref.load %arg1[%110] : memref<64xi32, #tpu.memory_space<smem>>
    %112 = arith.index_cast %111 : i32 to index
    %c0_64 = arith.constant 0 : index
    %113 = vector.load %arg2[%112, %c0_64] : memref<32x128xf32, #tpu.memory_space<vmem>>, vector<1x128xf32>
    %c5_65 = arith.constant 5 : index
    %c0_66 = arith.constant 0 : index
    %114 = vector.load %arg4[%c5_65, %c0_66] : memref<8x128xf32, #tpu.memory_space<vmem>>, vector<1x128xf32>
    tpu.vector_store %arg4[%c5_65, %c0_66], %113 {strides = array<i32>} : memref<8x128xf32, #tpu.memory_space<vmem>>, vector<1x128xf32>,
    %c6_i32_67 = arith.constant 6 : i32
    %115 = arith.addi %0, %c6_i32_67 : i32
    %c8_i32_68 = arith.constant 8 : i32
    %116 = arith.muli %115, %c8_i32_68 : i32
    %117 = arith.addi %116, %c1_i32_36 : i32
    %118 = arith.index_cast %117 : i32 to index
    %119 = memref.load %arg1[%118] : memref<64xi32, #tpu.memory_space<smem>>
    %120 = arith.index_cast %119 : i32 to index
    %c0_69 = arith.constant 0 : index
    %121 = vector.load %arg2[%120, %c0_69] : memref<32x128xf32, #tpu.memory_space<vmem>>, vector<1x128xf32>
    %c6_70 = arith.constant 6 : index
    %c0_71 = arith.constant 0 : index
    %122 = vector.load %arg4[%c6_70, %c0_71] : memref<8x128xf32, #tpu.memory_space<vmem>>, vector<1x128xf32>
    tpu.vector_store %arg4[%c6_70, %c0_71], %121 {strides = array<i32>} : memref<8x128xf32, #tpu.memory_space<vmem>>, vector<1x128xf32>,
    %c7_i32_72 = arith.constant 7 : i32
    %123 = arith.addi %0, %c7_i32_72 : i32
    %c8_i32_73 = arith.constant 8 : i32
    %124 = arith.muli %123, %c8_i32_73 : i32
    %125 = arith.addi %124, %c1_i32_36 : i32
    %126 = arith.index_cast %125 : i32 to index
    %127 = memref.load %arg1[%126] : memref<64xi32, #tpu.memory_space<smem>>
    %128 = arith.index_cast %127 : i32 to index
    %c0_74 = arith.constant 0 : index
    %129 = vector.load %arg2[%128, %c0_74] : memref<32x128xf32, #tpu.memory_space<vmem>>, vector<1x128xf32>
    %c7_75 = arith.constant 7 : index
    %c0_76 = arith.constant 0 : index
    %130 = vector.load %arg4[%c7_75, %c0_76] : memref<8x128xf32, #tpu.memory_space<vmem>>, vector<1x128xf32>
    tpu.vector_store %arg4[%c7_75, %c0_76], %129 {strides = array<i32>} : memref<8x128xf32, #tpu.memory_space<vmem>>, vector<1x128xf32>,
    %c0_77 = arith.constant 0 : index
    %c0_78 = arith.constant 0 : index
    %131 = vector.load %arg3[%c0_77, %c0_78] : memref<8x128xf32, #tpu.memory_space<vmem>>, vector<8x128xf32>
    %c0_79 = arith.constant 0 : index
    %c0_80 = arith.constant 0 : index
    %132 = vector.load %arg4[%c0_79, %c0_80] : memref<8x128xf32, #tpu.memory_space<vmem>>, vector<8x128xf32>
    %133 = arith.maximumf %131, %132 : vector<8x128xf32>
    %c0_81 = arith.constant 0 : index
    %c0_82 = arith.constant 0 : index
    %134 = vector.load %arg3[%c0_81, %c0_82] : memref<8x128xf32, #tpu.memory_space<vmem>>, vector<8x128xf32>
    tpu.vector_store %arg3[%c0_81, %c0_82], %133 {strides = array<i32>} : memref<8x128xf32, #tpu.memory_space<vmem>>, vector<8x128xf32>,
    %c2_i32_83 = arith.constant 2 : i32
    %c0_i32_84 = arith.constant 0 : i32
    %135 = arith.addi %0, %c0_i32_84 : i32
    %c8_i32_85 = arith.constant 8 : i32
    %136 = arith.muli %135, %c8_i32_85 : i32
    %137 = arith.addi %136, %c2_i32_83 : i32
    %138 = arith.index_cast %137 : i32 to index
    %139 = memref.load %arg1[%138] : memref<64xi32, #tpu.memory_space<smem>>
    %140 = arith.index_cast %139 : i32 to index
    %c0_86 = arith.constant 0 : index
    %141 = vector.load %arg2[%140, %c0_86] : memref<32x128xf32, #tpu.memory_space<vmem>>, vector<1x128xf32>
    %c0_87 = arith.constant 0 : index
    %c0_88 = arith.constant 0 : index
    %142 = vector.load %arg4[%c0_87, %c0_88] : memref<8x128xf32, #tpu.memory_space<vmem>>, vector<1x128xf32>
    tpu.vector_store %arg4[%c0_87, %c0_88], %141 {strides = array<i32>} : memref<8x128xf32, #tpu.memory_space<vmem>>, vector<1x128xf32>,
    %c1_i32_89 = arith.constant 1 : i32
    %143 = arith.addi %0, %c1_i32_89 : i32
    %c8_i32_90 = arith.constant 8 : i32
    %144 = arith.muli %143, %c8_i32_90 : i32
    %145 = arith.addi %144, %c2_i32_83 : i32
    %146 = arith.index_cast %145 : i32 to index
    %147 = memref.load %arg1[%146] : memref<64xi32, #tpu.memory_space<smem>>
    %148 = arith.index_cast %147 : i32 to index
    %c0_91 = arith.constant 0 : index
    %149 = vector.load %arg2[%148, %c0_91] : memref<32x128xf32, #tpu.memory_space<vmem>>, vector<1x128xf32>
    %c1_92 = arith.constant 1 : index
    %c0_93 = arith.constant 0 : index
    %150 = vector.load %arg4[%c1_92, %c0_93] : memref<8x128xf32, #tpu.memory_space<vmem>>, vector<1x128xf32>
    tpu.vector_store %arg4[%c1_92, %c0_93], %149 {strides = array<i32>} : memref<8x128xf32, #tpu.memory_space<vmem>>, vector<1x128xf32>,
    %c2_i32_94 = arith.constant 2 : i32
    %151 = arith.addi %0, %c2_i32_94 : i32
    %c8_i32_95 = arith.constant 8 : i32
    %152 = arith.muli %151, %c8_i32_95 : i32
    %153 = arith.addi %152, %c2_i32_83 : i32
    %154 = arith.index_cast %153 : i32 to index
    %155 = memref.load %arg1[%154] : memref<64xi32, #tpu.memory_space<smem>>
    %156 = arith.index_cast %155 : i32 to index
    %c0_96 = arith.constant 0 : index
    %157 = vector.load %arg2[%156, %c0_96] : memref<32x128xf32, #tpu.memory_space<vmem>>, vector<1x128xf32>
    %c2_97 = arith.constant 2 : index
    %c0_98 = arith.constant 0 : index
    %158 = vector.load %arg4[%c2_97, %c0_98] : memref<8x128xf32, #tpu.memory_space<vmem>>, vector<1x128xf32>
    tpu.vector_store %arg4[%c2_97, %c0_98], %157 {strides = array<i32>} : memref<8x128xf32, #tpu.memory_space<vmem>>, vector<1x128xf32>,
    %c3_i32_99 = arith.constant 3 : i32
    %159 = arith.addi %0, %c3_i32_99 : i32
    %c8_i32_100 = arith.constant 8 : i32
    %160 = arith.muli %159, %c8_i32_100 : i32
    %161 = arith.addi %160, %c2_i32_83 : i32
    %162 = arith.index_cast %161 : i32 to index
    %163 = memref.load %arg1[%162] : memref<64xi32, #tpu.memory_space<smem>>
    %164 = arith.index_cast %163 : i32 to index
    %c0_101 = arith.constant 0 : index
    %165 = vector.load %arg2[%164, %c0_101] : memref<32x128xf32, #tpu.memory_space<vmem>>, vector<1x128xf32>
    %c3_102 = arith.constant 3 : index
    %c0_103 = arith.constant 0 : index
    %166 = vector.load %arg4[%c3_102, %c0_103] : memref<8x128xf32, #tpu.memory_space<vmem>>, vector<1x128xf32>
    tpu.vector_store %arg4[%c3_102, %c0_103], %165 {strides = array<i32>} : memref<8x128xf32, #tpu.memory_space<vmem>>, vector<1x128xf32>,
    %c4_i32_104 = arith.constant 4 : i32
    %167 = arith.addi %0, %c4_i32_104 : i32
    %c8_i32_105 = arith.constant 8 : i32
    %168 = arith.muli %167, %c8_i32_105 : i32
    %169 = arith.addi %168, %c2_i32_83 : i32
    %170 = arith.index_cast %169 : i32 to index
    %171 = memref.load %arg1[%170] : memref<64xi32, #tpu.memory_space<smem>>
    %172 = arith.index_cast %171 : i32 to index
    %c0_106 = arith.constant 0 : index
    %173 = vector.load %arg2[%172, %c0_106] : memref<32x128xf32, #tpu.memory_space<vmem>>, vector<1x128xf32>
    %c4_107 = arith.constant 4 : index
    %c0_108 = arith.constant 0 : index
    %174 = vector.load %arg4[%c4_107, %c0_108] : memref<8x128xf32, #tpu.memory_space<vmem>>, vector<1x128xf32>
    tpu.vector_store %arg4[%c4_107, %c0_108], %173 {strides = array<i32>} : memref<8x128xf32, #tpu.memory_space<vmem>>, vector<1x128xf32>,
    %c5_i32_109 = arith.constant 5 : i32
    %175 = arith.addi %0, %c5_i32_109 : i32
    %c8_i32_110 = arith.constant 8 : i32
    %176 = arith.muli %175, %c8_i32_110 : i32
    %177 = arith.addi %176, %c2_i32_83 : i32
    %178 = arith.index_cast %177 : i32 to index
    %179 = memref.load %arg1[%178] : memref<64xi32, #tpu.memory_space<smem>>
    %180 = arith.index_cast %179 : i32 to index
    %c0_111 = arith.constant 0 : index
    %181 = vector.load %arg2[%180, %c0_111] : memref<32x128xf32, #tpu.memory_space<vmem>>, vector<1x128xf32>
    %c5_112 = arith.constant 5 : index
    %c0_113 = arith.constant 0 : index
    %182 = vector.load %arg4[%c5_112, %c0_113] : memref<8x128xf32, #tpu.memory_space<vmem>>, vector<1x128xf32>
    tpu.vector_store %arg4[%c5_112, %c0_113], %181 {strides = array<i32>} : memref<8x128xf32, #tpu.memory_space<vmem>>, vector<1x128xf32>,
    %c6_i32_114 = arith.constant 6 : i32
    %183 = arith.addi %0, %c6_i32_114 : i32
    %c8_i32_115 = arith.constant 8 : i32
    %184 = arith.muli %183, %c8_i32_115 : i32
    %185 = arith.addi %184, %c2_i32_83 : i32
    %186 = arith.index_cast %185 : i32 to index
    %187 = memref.load %arg1[%186] : memref<64xi32, #tpu.memory_space<smem>>
    %188 = arith.index_cast %187 : i32 to index
    %c0_116 = arith.constant 0 : index
    %189 = vector.load %arg2[%188, %c0_116] : memref<32x128xf32, #tpu.memory_space<vmem>>, vector<1x128xf32>
    %c6_117 = arith.constant 6 : index
    %c0_118 = arith.constant 0 : index
    %190 = vector.load %arg4[%c6_117, %c0_118] : memref<8x128xf32, #tpu.memory_space<vmem>>, vector<1x128xf32>
    tpu.vector_store %arg4[%c6_117, %c0_118], %189 {strides = array<i32>} : memref<8x128xf32, #tpu.memory_space<vmem>>, vector<1x128xf32>,
    %c7_i32_119 = arith.constant 7 : i32
    %191 = arith.addi %0, %c7_i32_119 : i32
    %c8_i32_120 = arith.constant 8 : i32
    %192 = arith.muli %191, %c8_i32_120 : i32
    %193 = arith.addi %192, %c2_i32_83 : i32
    %194 = arith.index_cast %193 : i32 to index
    %195 = memref.load %arg1[%194] : memref<64xi32, #tpu.memory_space<smem>>
    %196 = arith.index_cast %195 : i32 to index
    %c0_121 = arith.constant 0 : index
    %197 = vector.load %arg2[%196, %c0_121] : memref<32x128xf32, #tpu.memory_space<vmem>>, vector<1x128xf32>
    %c7_122 = arith.constant 7 : index
    %c0_123 = arith.constant 0 : index
    %198 = vector.load %arg4[%c7_122, %c0_123] : memref<8x128xf32, #tpu.memory_space<vmem>>, vector<1x128xf32>
    tpu.vector_store %arg4[%c7_122, %c0_123], %197 {strides = array<i32>} : memref<8x128xf32, #tpu.memory_space<vmem>>, vector<1x128xf32>,
    %c0_124 = arith.constant 0 : index
    %c0_125 = arith.constant 0 : index
    %199 = vector.load %arg3[%c0_124, %c0_125] : memref<8x128xf32, #tpu.memory_space<vmem>>, vector<8x128xf32>
    %c0_126 = arith.constant 0 : index
    %c0_127 = arith.constant 0 : index
    %200 = vector.load %arg4[%c0_126, %c0_127] : memref<8x128xf32, #tpu.memory_space<vmem>>, vector<8x128xf32>
    %201 = arith.maximumf %199, %200 : vector<8x128xf32>
    %c0_128 = arith.constant 0 : index
    %c0_129 = arith.constant 0 : index
    %202 = vector.load %arg3[%c0_128, %c0_129] : memref<8x128xf32, #tpu.memory_space<vmem>>, vector<8x128xf32>
    tpu.vector_store %arg3[%c0_128, %c0_129], %201 {strides = array<i32>} : memref<8x128xf32, #tpu.memory_space<vmem>>, vector<8x128xf32>,
    %c3_i32_130 = arith.constant 3 : i32
    %c0_i32_131 = arith.constant 0 : i32
    %203 = arith.addi %0, %c0_i32_131 : i32
    %c8_i32_132 = arith.constant 8 : i32
    %204 = arith.muli %203, %c8_i32_132 : i32
    %205 = arith.addi %204, %c3_i32_130 : i32
    %206 = arith.index_cast %205 : i32 to index
    %207 = memref.load %arg1[%206] : memref<64xi32, #tpu.memory_space<smem>>
    %208 = arith.index_cast %207 : i32 to index
    %c0_133 = arith.constant 0 : index
    %209 = vector.load %arg2[%208, %c0_133] : memref<32x128xf32, #tpu.memory_space<vmem>>, vector<1x128xf32>
    %c0_134 = arith.constant 0 : index
    %c0_135 = arith.constant 0 : index
    %210 = vector.load %arg4[%c0_134, %c0_135] : memref<8x128xf32, #tpu.memory_space<vmem>>, vector<1x128xf32>
    tpu.vector_store %arg4[%c0_134, %c0_135], %209 {strides = array<i32>} : memref<8x128xf32, #tpu.memory_space<vmem>>, vector<1x128xf32>,
    %c1_i32_136 = arith.constant 1 : i32
    %211 = arith.addi %0, %c1_i32_136 : i32
    %c8_i32_137 = arith.constant 8 : i32
    %212 = arith.muli %211, %c8_i32_137 : i32
    %213 = arith.addi %212, %c3_i32_130 : i32
    %214 = arith.index_cast %213 : i32 to index
    %215 = memref.load %arg1[%214] : memref<64xi32, #tpu.memory_space<smem>>
    %216 = arith.index_cast %215 : i32 to index
    %c0_138 = arith.constant 0 : index
    %217 = vector.load %arg2[%216, %c0_138] : memref<32x128xf32, #tpu.memory_space<vmem>>, vector<1x128xf32>
    %c1_139 = arith.constant 1 : index
    %c0_140 = arith.constant 0 : index
    %218 = vector.load %arg4[%c1_139, %c0_140] : memref<8x128xf32, #tpu.memory_space<vmem>>, vector<1x128xf32>
    tpu.vector_store %arg4[%c1_139, %c0_140], %217 {strides = array<i32>} : memref<8x128xf32, #tpu.memory_space<vmem>>, vector<1x128xf32>,
    %c2_i32_141 = arith.constant 2 : i32
    %219 = arith.addi %0, %c2_i32_141 : i32
    %c8_i32_142 = arith.constant 8 : i32
    %220 = arith.muli %219, %c8_i32_142 : i32
    %221 = arith.addi %220, %c3_i32_130 : i32
    %222 = arith.index_cast %221 : i32 to index
    %223 = memref.load %arg1[%222] : memref<64xi32, #tpu.memory_space<smem>>
    %224 = arith.index_cast %223 : i32 to index
    %c0_143 = arith.constant 0 : index
    %225 = vector.load %arg2[%224, %c0_143] : memref<32x128xf32, #tpu.memory_space<vmem>>, vector<1x128xf32>
    %c2_144 = arith.constant 2 : index
    %c0_145 = arith.constant 0 : index
    %226 = vector.load %arg4[%c2_144, %c0_145] : memref<8x128xf32, #tpu.memory_space<vmem>>, vector<1x128xf32>
    tpu.vector_store %arg4[%c2_144, %c0_145], %225 {strides = array<i32>} : memref<8x128xf32, #tpu.memory_space<vmem>>, vector<1x128xf32>,
    %c3_i32_146 = arith.constant 3 : i32
    %227 = arith.addi %0, %c3_i32_146 : i32
    %c8_i32_147 = arith.constant 8 : i32
    %228 = arith.muli %227, %c8_i32_147 : i32
    %229 = arith.addi %228, %c3_i32_130 : i32
    %230 = arith.index_cast %229 : i32 to index
    %231 = memref.load %arg1[%230] : memref<64xi32, #tpu.memory_space<smem>>
    %232 = arith.index_cast %231 : i32 to index
    %c0_148 = arith.constant 0 : index
    %233 = vector.load %arg2[%232, %c0_148] : memref<32x128xf32, #tpu.memory_space<vmem>>, vector<1x128xf32>
    %c3_149 = arith.constant 3 : index
    %c0_150 = arith.constant 0 : index
    %234 = vector.load %arg4[%c3_149, %c0_150] : memref<8x128xf32, #tpu.memory_space<vmem>>, vector<1x128xf32>
    tpu.vector_store %arg4[%c3_149, %c0_150], %233 {strides = array<i32>} : memref<8x128xf32, #tpu.memory_space<vmem>>, vector<1x128xf32>,
    %c4_i32_151 = arith.constant 4 : i32
    %235 = arith.addi %0, %c4_i32_151 : i32
    %c8_i32_152 = arith.constant 8 : i32
    %236 = arith.muli %235, %c8_i32_152 : i32
    %237 = arith.addi %236, %c3_i32_130 : i32
    %238 = arith.index_cast %237 : i32 to index
    %239 = memref.load %arg1[%238] : memref<64xi32, #tpu.memory_space<smem>>
    %240 = arith.index_cast %239 : i32 to index
    %c0_153 = arith.constant 0 : index
    %241 = vector.load %arg2[%240, %c0_153] : memref<32x128xf32, #tpu.memory_space<vmem>>, vector<1x128xf32>
    %c4_154 = arith.constant 4 : index
    %c0_155 = arith.constant 0 : index
    %242 = vector.load %arg4[%c4_154, %c0_155] : memref<8x128xf32, #tpu.memory_space<vmem>>, vector<1x128xf32>
    tpu.vector_store %arg4[%c4_154, %c0_155], %241 {strides = array<i32>} : memref<8x128xf32, #tpu.memory_space<vmem>>, vector<1x128xf32>,
    %c5_i32_156 = arith.constant 5 : i32
    %243 = arith.addi %0, %c5_i32_156 : i32
    %c8_i32_157 = arith.constant 8 : i32
    %244 = arith.muli %243, %c8_i32_157 : i32
    %245 = arith.addi %244, %c3_i32_130 : i32
    %246 = arith.index_cast %245 : i32 to index
    %247 = memref.load %arg1[%246] : memref<64xi32, #tpu.memory_space<smem>>
    %248 = arith.index_cast %247 : i32 to index
    %c0_158 = arith.constant 0 : index
    %249 = vector.load %arg2[%248, %c0_158] : memref<32x128xf32, #tpu.memory_space<vmem>>, vector<1x128xf32>
    %c5_159 = arith.constant 5 : index
    %c0_160 = arith.constant 0 : index
    %250 = vector.load %arg4[%c5_159, %c0_160] : memref<8x128xf32, #tpu.memory_space<vmem>>, vector<1x128xf32>
    tpu.vector_store %arg4[%c5_159, %c0_160], %249 {strides = array<i32>} : memref<8x128xf32, #tpu.memory_space<vmem>>, vector<1x128xf32>,
    %c6_i32_161 = arith.constant 6 : i32
    %251 = arith.addi %0, %c6_i32_161 : i32
    %c8_i32_162 = arith.constant 8 : i32
    %252 = arith.muli %251, %c8_i32_162 : i32
    %253 = arith.addi %252, %c3_i32_130 : i32
    %254 = arith.index_cast %253 : i32 to index
    %255 = memref.load %arg1[%254] : memref<64xi32, #tpu.memory_space<smem>>
    %256 = arith.index_cast %255 : i32 to index
    %c0_163 = arith.constant 0 : index
    %257 = vector.load %arg2[%256, %c0_163] : memref<32x128xf32, #tpu.memory_space<vmem>>, vector<1x128xf32>
    %c6_164 = arith.constant 6 : index
    %c0_165 = arith.constant 0 : index
    %258 = vector.load %arg4[%c6_164, %c0_165] : memref<8x128xf32, #tpu.memory_space<vmem>>, vector<1x128xf32>
    tpu.vector_store %arg4[%c6_164, %c0_165], %257 {strides = array<i32>} : memref<8x128xf32, #tpu.memory_space<vmem>>, vector<1x128xf32>,
    %c7_i32_166 = arith.constant 7 : i32
    %259 = arith.addi %0, %c7_i32_166 : i32
    %c8_i32_167 = arith.constant 8 : i32
    %260 = arith.muli %259, %c8_i32_167 : i32
    %261 = arith.addi %260, %c3_i32_130 : i32
    %262 = arith.index_cast %261 : i32 to index
    %263 = memref.load %arg1[%262] : memref<64xi32, #tpu.memory_space<smem>>
    %264 = arith.index_cast %263 : i32 to index
    %c0_168 = arith.constant 0 : index
    %265 = vector.load %arg2[%264, %c0_168] : memref<32x128xf32, #tpu.memory_space<vmem>>, vector<1x128xf32>
    %c7_169 = arith.constant 7 : index
    %c0_170 = arith.constant 0 : index
    %266 = vector.load %arg4[%c7_169, %c0_170] : memref<8x128xf32, #tpu.memory_space<vmem>>, vector<1x128xf32>
    tpu.vector_store %arg4[%c7_169, %c0_170], %265 {strides = array<i32>} : memref<8x128xf32, #tpu.memory_space<vmem>>, vector<1x128xf32>,
    %c0_171 = arith.constant 0 : index
    %c0_172 = arith.constant 0 : index
    %267 = vector.load %arg3[%c0_171, %c0_172] : memref<8x128xf32, #tpu.memory_space<vmem>>, vector<8x128xf32>
    %c0_173 = arith.constant 0 : index
    %c0_174 = arith.constant 0 : index
    %268 = vector.load %arg4[%c0_173, %c0_174] : memref<8x128xf32, #tpu.memory_space<vmem>>, vector<8x128xf32>
    %269 = arith.maximumf %267, %268 : vector<8x128xf32>
    %c0_175 = arith.constant 0 : index
    %c0_176 = arith.constant 0 : index
    %270 = vector.load %arg3[%c0_175, %c0_176] : memref<8x128xf32, #tpu.memory_space<vmem>>, vector<8x128xf32>
    tpu.vector_store %arg3[%c0_175, %c0_176], %269 {strides = array<i32>} : memref<8x128xf32, #tpu.memory_space<vmem>>, vector<8x128xf32>,
    %c4_i32_177 = arith.constant 4 : i32
    %c0_i32_178 = arith.constant 0 : i32
    %271 = arith.addi %0, %c0_i32_178 : i32
    %c8_i32_179 = arith.constant 8 : i32
    %272 = arith.muli %271, %c8_i32_179 : i32
    %273 = arith.addi %272, %c4_i32_177 : i32
    %274 = arith.index_cast %273 : i32 to index
    %275 = memref.load %arg1[%274] : memref<64xi32, #tpu.memory_space<smem>>
    %276 = arith.index_cast %275 : i32 to index
    %c0_180 = arith.constant 0 : index
    %277 = vector.load %arg2[%276, %c0_180] : memref<32x128xf32, #tpu.memory_space<vmem>>, vector<1x128xf32>
    %c0_181 = arith.constant 0 : index
    %c0_182 = arith.constant 0 : index
    %278 = vector.load %arg4[%c0_181, %c0_182] : memref<8x128xf32, #tpu.memory_space<vmem>>, vector<1x128xf32>
    tpu.vector_store %arg4[%c0_181, %c0_182], %277 {strides = array<i32>} : memref<8x128xf32, #tpu.memory_space<vmem>>, vector<1x128xf32>,
    %c1_i32_183 = arith.constant 1 : i32
    %279 = arith.addi %0, %c1_i32_183 : i32
    %c8_i32_184 = arith.constant 8 : i32
    %280 = arith.muli %279, %c8_i32_184 : i32
    %281 = arith.addi %280, %c4_i32_177 : i32
    %282 = arith.index_cast %281 : i32 to index
    %283 = memref.load %arg1[%282] : memref<64xi32, #tpu.memory_space<smem>>
    %284 = arith.index_cast %283 : i32 to index
    %c0_185 = arith.constant 0 : index
    %285 = vector.load %arg2[%284, %c0_185] : memref<32x128xf32, #tpu.memory_space<vmem>>, vector<1x128xf32>
    %c1_186 = arith.constant 1 : index
    %c0_187 = arith.constant 0 : index
    %286 = vector.load %arg4[%c1_186, %c0_187] : memref<8x128xf32, #tpu.memory_space<vmem>>, vector<1x128xf32>
    tpu.vector_store %arg4[%c1_186, %c0_187], %285 {strides = array<i32>} : memref<8x128xf32, #tpu.memory_space<vmem>>, vector<1x128xf32>,
    %c2_i32_188 = arith.constant 2 : i32
    %287 = arith.addi %0, %c2_i32_188 : i32
    %c8_i32_189 = arith.constant 8 : i32
    %288 = arith.muli %287, %c8_i32_189 : i32
    %289 = arith.addi %288, %c4_i32_177 : i32
    %290 = arith.index_cast %289 : i32 to index
    %291 = memref.load %arg1[%290] : memref<64xi32, #tpu.memory_space<smem>>
    %292 = arith.index_cast %291 : i32 to index
    %c0_190 = arith.constant 0 : index
    %293 = vector.load %arg2[%292, %c0_190] : memref<32x128xf32, #tpu.memory_space<vmem>>, vector<1x128xf32>
    %c2_191 = arith.constant 2 : index
    %c0_192 = arith.constant 0 : index
    %294 = vector.load %arg4[%c2_191, %c0_192] : memref<8x128xf32, #tpu.memory_space<vmem>>, vector<1x128xf32>
    tpu.vector_store %arg4[%c2_191, %c0_192], %293 {strides = array<i32>} : memref<8x128xf32, #tpu.memory_space<vmem>>, vector<1x128xf32>,
    %c3_i32_193 = arith.constant 3 : i32
    %295 = arith.addi %0, %c3_i32_193 : i32
    %c8_i32_194 = arith.constant 8 : i32
    %296 = arith.muli %295, %c8_i32_194 : i32
    %297 = arith.addi %296, %c4_i32_177 : i32
    %298 = arith.index_cast %297 : i32 to index
    %299 = memref.load %arg1[%298] : memref<64xi32, #tpu.memory_space<smem>>
    %300 = arith.index_cast %299 : i32 to index
    %c0_195 = arith.constant 0 : index
    %301 = vector.load %arg2[%300, %c0_195] : memref<32x128xf32, #tpu.memory_space<vmem>>, vector<1x128xf32>
    %c3_196 = arith.constant 3 : index
    %c0_197 = arith.constant 0 : index
    %302 = vector.load %arg4[%c3_196, %c0_197] : memref<8x128xf32, #tpu.memory_space<vmem>>, vector<1x128xf32>
    tpu.vector_store %arg4[%c3_196, %c0_197], %301 {strides = array<i32>} : memref<8x128xf32, #tpu.memory_space<vmem>>, vector<1x128xf32>,
    %c4_i32_198 = arith.constant 4 : i32
    %303 = arith.addi %0, %c4_i32_198 : i32
    %c8_i32_199 = arith.constant 8 : i32
    %304 = arith.muli %303, %c8_i32_199 : i32
    %305 = arith.addi %304, %c4_i32_177 : i32
    %306 = arith.index_cast %305 : i32 to index
    %307 = memref.load %arg1[%306] : memref<64xi32, #tpu.memory_space<smem>>
    %308 = arith.index_cast %307 : i32 to index
    %c0_200 = arith.constant 0 : index
    %309 = vector.load %arg2[%308, %c0_200] : memref<32x128xf32, #tpu.memory_space<vmem>>, vector<1x128xf32>
    %c4_201 = arith.constant 4 : index
    %c0_202 = arith.constant 0 : index
    %310 = vector.load %arg4[%c4_201, %c0_202] : memref<8x128xf32, #tpu.memory_space<vmem>>, vector<1x128xf32>
    tpu.vector_store %arg4[%c4_201, %c0_202], %309 {strides = array<i32>} : memref<8x128xf32, #tpu.memory_space<vmem>>, vector<1x128xf32>,
    %c5_i32_203 = arith.constant 5 : i32
    %311 = arith.addi %0, %c5_i32_203 : i32
    %c8_i32_204 = arith.constant 8 : i32
    %312 = arith.muli %311, %c8_i32_204 : i32
    %313 = arith.addi %312, %c4_i32_177 : i32
    %314 = arith.index_cast %313 : i32 to index
    %315 = memref.load %arg1[%314] : memref<64xi32, #tpu.memory_space<smem>>
    %316 = arith.index_cast %315 : i32 to index
    %c0_205 = arith.constant 0 : index
    %317 = vector.load %arg2[%316, %c0_205] : memref<32x128xf32, #tpu.memory_space<vmem>>, vector<1x128xf32>
    %c5_206 = arith.constant 5 : index
    %c0_207 = arith.constant 0 : index
    %318 = vector.load %arg4[%c5_206, %c0_207] : memref<8x128xf32, #tpu.memory_space<vmem>>, vector<1x128xf32>
    tpu.vector_store %arg4[%c5_206, %c0_207], %317 {strides = array<i32>} : memref<8x128xf32, #tpu.memory_space<vmem>>, vector<1x128xf32>,
    %c6_i32_208 = arith.constant 6 : i32
    %319 = arith.addi %0, %c6_i32_208 : i32
    %c8_i32_209 = arith.constant 8 : i32
    %320 = arith.muli %319, %c8_i32_209 : i32
    %321 = arith.addi %320, %c4_i32_177 : i32
    %322 = arith.index_cast %321 : i32 to index
    %323 = memref.load %arg1[%322] : memref<64xi32, #tpu.memory_space<smem>>
    %324 = arith.index_cast %323 : i32 to index
    %c0_210 = arith.constant 0 : index
    %325 = vector.load %arg2[%324, %c0_210] : memref<32x128xf32, #tpu.memory_space<vmem>>, vector<1x128xf32>
    %c6_211 = arith.constant 6 : index
    %c0_212 = arith.constant 0 : index
    %326 = vector.load %arg4[%c6_211, %c0_212] : memref<8x128xf32, #tpu.memory_space<vmem>>, vector<1x128xf32>
    tpu.vector_store %arg4[%c6_211, %c0_212], %325 {strides = array<i32>} : memref<8x128xf32, #tpu.memory_space<vmem>>, vector<1x128xf32>,
    %c7_i32_213 = arith.constant 7 : i32
    %327 = arith.addi %0, %c7_i32_213 : i32
    %c8_i32_214 = arith.constant 8 : i32
    %328 = arith.muli %327, %c8_i32_214 : i32
    %329 = arith.addi %328, %c4_i32_177 : i32
    %330 = arith.index_cast %329 : i32 to index
    %331 = memref.load %arg1[%330] : memref<64xi32, #tpu.memory_space<smem>>
    %332 = arith.index_cast %331 : i32 to index
    %c0_215 = arith.constant 0 : index
    %333 = vector.load %arg2[%332, %c0_215] : memref<32x128xf32, #tpu.memory_space<vmem>>, vector<1x128xf32>
    %c7_216 = arith.constant 7 : index
    %c0_217 = arith.constant 0 : index
    %334 = vector.load %arg4[%c7_216, %c0_217] : memref<8x128xf32, #tpu.memory_space<vmem>>, vector<1x128xf32>
    tpu.vector_store %arg4[%c7_216, %c0_217], %333 {strides = array<i32>} : memref<8x128xf32, #tpu.memory_space<vmem>>, vector<1x128xf32>,
    %c0_218 = arith.constant 0 : index
    %c0_219 = arith.constant 0 : index
    %335 = vector.load %arg3[%c0_218, %c0_219] : memref<8x128xf32, #tpu.memory_space<vmem>>, vector<8x128xf32>
    %c0_220 = arith.constant 0 : index
    %c0_221 = arith.constant 0 : index
    %336 = vector.load %arg4[%c0_220, %c0_221] : memref<8x128xf32, #tpu.memory_space<vmem>>, vector<8x128xf32>
    %337 = arith.maximumf %335, %336 : vector<8x128xf32>
    %c0_222 = arith.constant 0 : index
    %c0_223 = arith.constant 0 : index
    %338 = vector.load %arg3[%c0_222, %c0_223] : memref<8x128xf32, #tpu.memory_space<vmem>>, vector<8x128xf32>
    tpu.vector_store %arg3[%c0_222, %c0_223], %337 {strides = array<i32>} : memref<8x128xf32, #tpu.memory_space<vmem>>, vector<8x128xf32>,
    %c5_i32_224 = arith.constant 5 : i32
    %c0_i32_225 = arith.constant 0 : i32
    %339 = arith.addi %0, %c0_i32_225 : i32
    %c8_i32_226 = arith.constant 8 : i32
    %340 = arith.muli %339, %c8_i32_226 : i32
    %341 = arith.addi %340, %c5_i32_224 : i32
    %342 = arith.index_cast %341 : i32 to index
    %343 = memref.load %arg1[%342] : memref<64xi32, #tpu.memory_space<smem>>
    %344 = arith.index_cast %343 : i32 to index
    %c0_227 = arith.constant 0 : index
    %345 = vector.load %arg2[%344, %c0_227] : memref<32x128xf32, #tpu.memory_space<vmem>>, vector<1x128xf32>
    %c0_228 = arith.constant 0 : index
    %c0_229 = arith.constant 0 : index
    %346 = vector.load %arg4[%c0_228, %c0_229] : memref<8x128xf32, #tpu.memory_space<vmem>>, vector<1x128xf32>
    tpu.vector_store %arg4[%c0_228, %c0_229], %345 {strides = array<i32>} : memref<8x128xf32, #tpu.memory_space<vmem>>, vector<1x128xf32>,
    %c1_i32_230 = arith.constant 1 : i32
    %347 = arith.addi %0, %c1_i32_230 : i32
    %c8_i32_231 = arith.constant 8 : i32
    %348 = arith.muli %347, %c8_i32_231 : i32
    %349 = arith.addi %348, %c5_i32_224 : i32
    %350 = arith.index_cast %349 : i32 to index
    %351 = memref.load %arg1[%350] : memref<64xi32, #tpu.memory_space<smem>>
    %352 = arith.index_cast %351 : i32 to index
    %c0_232 = arith.constant 0 : index
    %353 = vector.load %arg2[%352, %c0_232] : memref<32x128xf32, #tpu.memory_space<vmem>>, vector<1x128xf32>
    %c1_233 = arith.constant 1 : index
    %c0_234 = arith.constant 0 : index
    %354 = vector.load %arg4[%c1_233, %c0_234] : memref<8x128xf32, #tpu.memory_space<vmem>>, vector<1x128xf32>
    tpu.vector_store %arg4[%c1_233, %c0_234], %353 {strides = array<i32>} : memref<8x128xf32, #tpu.memory_space<vmem>>, vector<1x128xf32>,
    %c2_i32_235 = arith.constant 2 : i32
    %355 = arith.addi %0, %c2_i32_235 : i32
    %c8_i32_236 = arith.constant 8 : i32
    %356 = arith.muli %355, %c8_i32_236 : i32
    %357 = arith.addi %356, %c5_i32_224 : i32
    %358 = arith.index_cast %357 : i32 to index
    %359 = memref.load %arg1[%358] : memref<64xi32, #tpu.memory_space<smem>>
    %360 = arith.index_cast %359 : i32 to index
    %c0_237 = arith.constant 0 : index
    %361 = vector.load %arg2[%360, %c0_237] : memref<32x128xf32, #tpu.memory_space<vmem>>, vector<1x128xf32>
    %c2_238 = arith.constant 2 : index
    %c0_239 = arith.constant 0 : index
    %362 = vector.load %arg4[%c2_238, %c0_239] : memref<8x128xf32, #tpu.memory_space<vmem>>, vector<1x128xf32>
    tpu.vector_store %arg4[%c2_238, %c0_239], %361 {strides = array<i32>} : memref<8x128xf32, #tpu.memory_space<vmem>>, vector<1x128xf32>,
    %c3_i32_240 = arith.constant 3 : i32
    %363 = arith.addi %0, %c3_i32_240 : i32
    %c8_i32_241 = arith.constant 8 : i32
    %364 = arith.muli %363, %c8_i32_241 : i32
    %365 = arith.addi %364, %c5_i32_224 : i32
    %366 = arith.index_cast %365 : i32 to index
    %367 = memref.load %arg1[%366] : memref<64xi32, #tpu.memory_space<smem>>
    %368 = arith.index_cast %367 : i32 to index
    %c0_242 = arith.constant 0 : index
    %369 = vector.load %arg2[%368, %c0_242] : memref<32x128xf32, #tpu.memory_space<vmem>>, vector<1x128xf32>
    %c3_243 = arith.constant 3 : index
    %c0_244 = arith.constant 0 : index
    %370 = vector.load %arg4[%c3_243, %c0_244] : memref<8x128xf32, #tpu.memory_space<vmem>>, vector<1x128xf32>
    tpu.vector_store %arg4[%c3_243, %c0_244], %369 {strides = array<i32>} : memref<8x128xf32, #tpu.memory_space<vmem>>, vector<1x128xf32>,
    %c4_i32_245 = arith.constant 4 : i32
    %371 = arith.addi %0, %c4_i32_245 : i32
    %c8_i32_246 = arith.constant 8 : i32
    %372 = arith.muli %371, %c8_i32_246 : i32
    %373 = arith.addi %372, %c5_i32_224 : i32
    %374 = arith.index_cast %373 : i32 to index
    %375 = memref.load %arg1[%374] : memref<64xi32, #tpu.memory_space<smem>>
    %376 = arith.index_cast %375 : i32 to index
    %c0_247 = arith.constant 0 : index
    %377 = vector.load %arg2[%376, %c0_247] : memref<32x128xf32, #tpu.memory_space<vmem>>, vector<1x128xf32>
    %c4_248 = arith.constant 4 : index
    %c0_249 = arith.constant 0 : index
    %378 = vector.load %arg4[%c4_248, %c0_249] : memref<8x128xf32, #tpu.memory_space<vmem>>, vector<1x128xf32>
    tpu.vector_store %arg4[%c4_248, %c0_249], %377 {strides = array<i32>} : memref<8x128xf32, #tpu.memory_space<vmem>>, vector<1x128xf32>,
    %c5_i32_250 = arith.constant 5 : i32
    %379 = arith.addi %0, %c5_i32_250 : i32
    %c8_i32_251 = arith.constant 8 : i32
    %380 = arith.muli %379, %c8_i32_251 : i32
    %381 = arith.addi %380, %c5_i32_224 : i32
    %382 = arith.index_cast %381 : i32 to index
    %383 = memref.load %arg1[%382] : memref<64xi32, #tpu.memory_space<smem>>
    %384 = arith.index_cast %383 : i32 to index
    %c0_252 = arith.constant 0 : index
    %385 = vector.load %arg2[%384, %c0_252] : memref<32x128xf32, #tpu.memory_space<vmem>>, vector<1x128xf32>
    %c5_253 = arith.constant 5 : index
    %c0_254 = arith.constant 0 : index
    %386 = vector.load %arg4[%c5_253, %c0_254] : memref<8x128xf32, #tpu.memory_space<vmem>>, vector<1x128xf32>
    tpu.vector_store %arg4[%c5_253, %c0_254], %385 {strides = array<i32>} : memref<8x128xf32, #tpu.memory_space<vmem>>, vector<1x128xf32>,
    %c6_i32_255 = arith.constant 6 : i32
    %387 = arith.addi %0, %c6_i32_255 : i32
    %c8_i32_256 = arith.constant 8 : i32
    %388 = arith.muli %387, %c8_i32_256 : i32
    %389 = arith.addi %388, %c5_i32_224 : i32
    %390 = arith.index_cast %389 : i32 to index
    %391 = memref.load %arg1[%390] : memref<64xi32, #tpu.memory_space<smem>>
    %392 = arith.index_cast %391 : i32 to index
    %c0_257 = arith.constant 0 : index
    %393 = vector.load %arg2[%392, %c0_257] : memref<32x128xf32, #tpu.memory_space<vmem>>, vector<1x128xf32>
    %c6_258 = arith.constant 6 : index
    %c0_259 = arith.constant 0 : index
    %394 = vector.load %arg4[%c6_258, %c0_259] : memref<8x128xf32, #tpu.memory_space<vmem>>, vector<1x128xf32>
    tpu.vector_store %arg4[%c6_258, %c0_259], %393 {strides = array<i32>} : memref<8x128xf32, #tpu.memory_space<vmem>>, vector<1x128xf32>,
    %c7_i32_260 = arith.constant 7 : i32
    %395 = arith.addi %0, %c7_i32_260 : i32
    %c8_i32_261 = arith.constant 8 : i32
    %396 = arith.muli %395, %c8_i32_261 : i32
    %397 = arith.addi %396, %c5_i32_224 : i32
    %398 = arith.index_cast %397 : i32 to index
    %399 = memref.load %arg1[%398] : memref<64xi32, #tpu.memory_space<smem>>
    %400 = arith.index_cast %399 : i32 to index
    %c0_262 = arith.constant 0 : index
    %401 = vector.load %arg2[%400, %c0_262] : memref<32x128xf32, #tpu.memory_space<vmem>>, vector<1x128xf32>
    %c7_263 = arith.constant 7 : index
    %c0_264 = arith.constant 0 : index
    %402 = vector.load %arg4[%c7_263, %c0_264] : memref<8x128xf32, #tpu.memory_space<vmem>>, vector<1x128xf32>
    tpu.vector_store %arg4[%c7_263, %c0_264], %401 {strides = array<i32>} : memref<8x128xf32, #tpu.memory_space<vmem>>, vector<1x128xf32>,
    %c0_265 = arith.constant 0 : index
    %c0_266 = arith.constant 0 : index
    %403 = vector.load %arg3[%c0_265, %c0_266] : memref<8x128xf32, #tpu.memory_space<vmem>>, vector<8x128xf32>
    %c0_267 = arith.constant 0 : index
    %c0_268 = arith.constant 0 : index
    %404 = vector.load %arg4[%c0_267, %c0_268] : memref<8x128xf32, #tpu.memory_space<vmem>>, vector<8x128xf32>
    %405 = arith.maximumf %403, %404 : vector<8x128xf32>
    %c0_269 = arith.constant 0 : index
    %c0_270 = arith.constant 0 : index
    %406 = vector.load %arg3[%c0_269, %c0_270] : memref<8x128xf32, #tpu.memory_space<vmem>>, vector<8x128xf32>
    tpu.vector_store %arg3[%c0_269, %c0_270], %405 {strides = array<i32>} : memref<8x128xf32, #tpu.memory_space<vmem>>, vector<8x128xf32>,
    %c6_i32_271 = arith.constant 6 : i32
    %c0_i32_272 = arith.constant 0 : i32
    %407 = arith.addi %0, %c0_i32_272 : i32
    %c8_i32_273 = arith.constant 8 : i32
    %408 = arith.muli %407, %c8_i32_273 : i32
    %409 = arith.addi %408, %c6_i32_271 : i32
    %410 = arith.index_cast %409 : i32 to index
    %411 = memref.load %arg1[%410] : memref<64xi32, #tpu.memory_space<smem>>
    %412 = arith.index_cast %411 : i32 to index
    %c0_274 = arith.constant 0 : index
    %413 = vector.load %arg2[%412, %c0_274] : memref<32x128xf32, #tpu.memory_space<vmem>>, vector<1x128xf32>
    %c0_275 = arith.constant 0 : index
    %c0_276 = arith.constant 0 : index
    %414 = vector.load %arg4[%c0_275, %c0_276] : memref<8x128xf32, #tpu.memory_space<vmem>>, vector<1x128xf32>
    tpu.vector_store %arg4[%c0_275, %c0_276], %413 {strides = array<i32>} : memref<8x128xf32, #tpu.memory_space<vmem>>, vector<1x128xf32>,
    %c1_i32_277 = arith.constant 1 : i32
    %415 = arith.addi %0, %c1_i32_277 : i32
    %c8_i32_278 = arith.constant 8 : i32
    %416 = arith.muli %415, %c8_i32_278 : i32
    %417 = arith.addi %416, %c6_i32_271 : i32
    %418 = arith.index_cast %417 : i32 to index
    %419 = memref.load %arg1[%418] : memref<64xi32, #tpu.memory_space<smem>>
    %420 = arith.index_cast %419 : i32 to index
    %c0_279 = arith.constant 0 : index
    %421 = vector.load %arg2[%420, %c0_279] : memref<32x128xf32, #tpu.memory_space<vmem>>, vector<1x128xf32>
    %c1_280 = arith.constant 1 : index
    %c0_281 = arith.constant 0 : index
    %422 = vector.load %arg4[%c1_280, %c0_281] : memref<8x128xf32, #tpu.memory_space<vmem>>, vector<1x128xf32>
    tpu.vector_store %arg4[%c1_280, %c0_281], %421 {strides = array<i32>} : memref<8x128xf32, #tpu.memory_space<vmem>>, vector<1x128xf32>,
    %c2_i32_282 = arith.constant 2 : i32
    %423 = arith.addi %0, %c2_i32_282 : i32
    %c8_i32_283 = arith.constant 8 : i32
    %424 = arith.muli %423, %c8_i32_283 : i32
    %425 = arith.addi %424, %c6_i32_271 : i32
    %426 = arith.index_cast %425 : i32 to index
    %427 = memref.load %arg1[%426] : memref<64xi32, #tpu.memory_space<smem>>
    %428 = arith.index_cast %427 : i32 to index
    %c0_284 = arith.constant 0 : index
    %429 = vector.load %arg2[%428, %c0_284] : memref<32x128xf32, #tpu.memory_space<vmem>>, vector<1x128xf32>
    %c2_285 = arith.constant 2 : index
    %c0_286 = arith.constant 0 : index
    %430 = vector.load %arg4[%c2_285, %c0_286] : memref<8x128xf32, #tpu.memory_space<vmem>>, vector<1x128xf32>
    tpu.vector_store %arg4[%c2_285, %c0_286], %429 {strides = array<i32>} : memref<8x128xf32, #tpu.memory_space<vmem>>, vector<1x128xf32>,
    %c3_i32_287 = arith.constant 3 : i32
    %431 = arith.addi %0, %c3_i32_287 : i32
    %c8_i32_288 = arith.constant 8 : i32
    %432 = arith.muli %431, %c8_i32_288 : i32
    %433 = arith.addi %432, %c6_i32_271 : i32
    %434 = arith.index_cast %433 : i32 to index
    %435 = memref.load %arg1[%434] : memref<64xi32, #tpu.memory_space<smem>>
    %436 = arith.index_cast %435 : i32 to index
    %c0_289 = arith.constant 0 : index
    %437 = vector.load %arg2[%436, %c0_289] : memref<32x128xf32, #tpu.memory_space<vmem>>, vector<1x128xf32>
    %c3_290 = arith.constant 3 : index
    %c0_291 = arith.constant 0 : index
    %438 = vector.load %arg4[%c3_290, %c0_291] : memref<8x128xf32, #tpu.memory_space<vmem>>, vector<1x128xf32>
    tpu.vector_store %arg4[%c3_290, %c0_291], %437 {strides = array<i32>} : memref<8x128xf32, #tpu.memory_space<vmem>>, vector<1x128xf32>,
    %c4_i32_292 = arith.constant 4 : i32
    %439 = arith.addi %0, %c4_i32_292 : i32
    %c8_i32_293 = arith.constant 8 : i32
    %440 = arith.muli %439, %c8_i32_293 : i32
    %441 = arith.addi %440, %c6_i32_271 : i32
    %442 = arith.index_cast %441 : i32 to index
    %443 = memref.load %arg1[%442] : memref<64xi32, #tpu.memory_space<smem>>
    %444 = arith.index_cast %443 : i32 to index
    %c0_294 = arith.constant 0 : index
    %445 = vector.load %arg2[%444, %c0_294] : memref<32x128xf32, #tpu.memory_space<vmem>>, vector<1x128xf32>
    %c4_295 = arith.constant 4 : index
    %c0_296 = arith.constant 0 : index
    %446 = vector.load %arg4[%c4_295, %c0_296] : memref<8x128xf32, #tpu.memory_space<vmem>>, vector<1x128xf32>
    tpu.vector_store %arg4[%c4_295, %c0_296], %445 {strides = array<i32>} : memref<8x128xf32, #tpu.memory_space<vmem>>, vector<1x128xf32>,
    %c5_i32_297 = arith.constant 5 : i32
    %447 = arith.addi %0, %c5_i32_297 : i32
    %c8_i32_298 = arith.constant 8 : i32
    %448 = arith.muli %447, %c8_i32_298 : i32
    %449 = arith.addi %448, %c6_i32_271 : i32
    %450 = arith.index_cast %449 : i32 to index
    %451 = memref.load %arg1[%450] : memref<64xi32, #tpu.memory_space<smem>>
    %452 = arith.index_cast %451 : i32 to index
    %c0_299 = arith.constant 0 : index
    %453 = vector.load %arg2[%452, %c0_299] : memref<32x128xf32, #tpu.memory_space<vmem>>, vector<1x128xf32>
    %c5_300 = arith.constant 5 : index
    %c0_301 = arith.constant 0 : index
    %454 = vector.load %arg4[%c5_300, %c0_301] : memref<8x128xf32, #tpu.memory_space<vmem>>, vector<1x128xf32>
    tpu.vector_store %arg4[%c5_300, %c0_301], %453 {strides = array<i32>} : memref<8x128xf32, #tpu.memory_space<vmem>>, vector<1x128xf32>,
    %c6_i32_302 = arith.constant 6 : i32
    %455 = arith.addi %0, %c6_i32_302 : i32
    %c8_i32_303 = arith.constant 8 : i32
    %456 = arith.muli %455, %c8_i32_303 : i32
    %457 = arith.addi %456, %c6_i32_271 : i32
    %458 = arith.index_cast %457 : i32 to index
    %459 = memref.load %arg1[%458] : memref<64xi32, #tpu.memory_space<smem>>
    %460 = arith.index_cast %459 : i32 to index
    %c0_304 = arith.constant 0 : index
    %461 = vector.load %arg2[%460, %c0_304] : memref<32x128xf32, #tpu.memory_space<vmem>>, vector<1x128xf32>
    %c6_305 = arith.constant 6 : index
    %c0_306 = arith.constant 0 : index
    %462 = vector.load %arg4[%c6_305, %c0_306] : memref<8x128xf32, #tpu.memory_space<vmem>>, vector<1x128xf32>
    tpu.vector_store %arg4[%c6_305, %c0_306], %461 {strides = array<i32>} : memref<8x128xf32, #tpu.memory_space<vmem>>, vector<1x128xf32>,
    %c7_i32_307 = arith.constant 7 : i32
    %463 = arith.addi %0, %c7_i32_307 : i32
    %c8_i32_308 = arith.constant 8 : i32
    %464 = arith.muli %463, %c8_i32_308 : i32
    %465 = arith.addi %464, %c6_i32_271 : i32
    %466 = arith.index_cast %465 : i32 to index
    %467 = memref.load %arg1[%466] : memref<64xi32, #tpu.memory_space<smem>>
    %468 = arith.index_cast %467 : i32 to index
    %c0_309 = arith.constant 0 : index
    %469 = vector.load %arg2[%468, %c0_309] : memref<32x128xf32, #tpu.memory_space<vmem>>, vector<1x128xf32>
    %c7_310 = arith.constant 7 : index
    %c0_311 = arith.constant 0 : index
    %470 = vector.load %arg4[%c7_310, %c0_311] : memref<8x128xf32, #tpu.memory_space<vmem>>, vector<1x128xf32>
    tpu.vector_store %arg4[%c7_310, %c0_311], %469 {strides = array<i32>} : memref<8x128xf32, #tpu.memory_space<vmem>>, vector<1x128xf32>,
    %c0_312 = arith.constant 0 : index
    %c0_313 = arith.constant 0 : index
    %471 = vector.load %arg3[%c0_312, %c0_313] : memref<8x128xf32, #tpu.memory_space<vmem>>, vector<8x128xf32>
    %c0_314 = arith.constant 0 : index
    %c0_315 = arith.constant 0 : index
    %472 = vector.load %arg4[%c0_314, %c0_315] : memref<8x128xf32, #tpu.memory_space<vmem>>, vector<8x128xf32>
    %473 = arith.maximumf %471, %472 : vector<8x128xf32>
    %c0_316 = arith.constant 0 : index
    %c0_317 = arith.constant 0 : index
    %474 = vector.load %arg3[%c0_316, %c0_317] : memref<8x128xf32, #tpu.memory_space<vmem>>, vector<8x128xf32>
    tpu.vector_store %arg3[%c0_316, %c0_317], %473 {strides = array<i32>} : memref<8x128xf32, #tpu.memory_space<vmem>>, vector<8x128xf32>,
    %c7_i32_318 = arith.constant 7 : i32
    %c0_i32_319 = arith.constant 0 : i32
    %475 = arith.addi %0, %c0_i32_319 : i32
    %c8_i32_320 = arith.constant 8 : i32
    %476 = arith.muli %475, %c8_i32_320 : i32
    %477 = arith.addi %476, %c7_i32_318 : i32
    %478 = arith.index_cast %477 : i32 to index
    %479 = memref.load %arg1[%478] : memref<64xi32, #tpu.memory_space<smem>>
    %480 = arith.index_cast %479 : i32 to index
    %c0_321 = arith.constant 0 : index
    %481 = vector.load %arg2[%480, %c0_321] : memref<32x128xf32, #tpu.memory_space<vmem>>, vector<1x128xf32>
    %c0_322 = arith.constant 0 : index
    %c0_323 = arith.constant 0 : index
    %482 = vector.load %arg4[%c0_322, %c0_323] : memref<8x128xf32, #tpu.memory_space<vmem>>, vector<1x128xf32>
    tpu.vector_store %arg4[%c0_322, %c0_323], %481 {strides = array<i32>} : memref<8x128xf32, #tpu.memory_space<vmem>>, vector<1x128xf32>,
    %c1_i32_324 = arith.constant 1 : i32
    %483 = arith.addi %0, %c1_i32_324 : i32
    %c8_i32_325 = arith.constant 8 : i32
    %484 = arith.muli %483, %c8_i32_325 : i32
    %485 = arith.addi %484, %c7_i32_318 : i32
    %486 = arith.index_cast %485 : i32 to index
    %487 = memref.load %arg1[%486] : memref<64xi32, #tpu.memory_space<smem>>
    %488 = arith.index_cast %487 : i32 to index
    %c0_326 = arith.constant 0 : index
    %489 = vector.load %arg2[%488, %c0_326] : memref<32x128xf32, #tpu.memory_space<vmem>>, vector<1x128xf32>
    %c1_327 = arith.constant 1 : index
    %c0_328 = arith.constant 0 : index
    %490 = vector.load %arg4[%c1_327, %c0_328] : memref<8x128xf32, #tpu.memory_space<vmem>>, vector<1x128xf32>
    tpu.vector_store %arg4[%c1_327, %c0_328], %489 {strides = array<i32>} : memref<8x128xf32, #tpu.memory_space<vmem>>, vector<1x128xf32>,
    %c2_i32_329 = arith.constant 2 : i32
    %491 = arith.addi %0, %c2_i32_329 : i32
    %c8_i32_330 = arith.constant 8 : i32
    %492 = arith.muli %491, %c8_i32_330 : i32
    %493 = arith.addi %492, %c7_i32_318 : i32
    %494 = arith.index_cast %493 : i32 to index
    %495 = memref.load %arg1[%494] : memref<64xi32, #tpu.memory_space<smem>>
    %496 = arith.index_cast %495 : i32 to index
    %c0_331 = arith.constant 0 : index
    %497 = vector.load %arg2[%496, %c0_331] : memref<32x128xf32, #tpu.memory_space<vmem>>, vector<1x128xf32>
    %c2_332 = arith.constant 2 : index
    %c0_333 = arith.constant 0 : index
    %498 = vector.load %arg4[%c2_332, %c0_333] : memref<8x128xf32, #tpu.memory_space<vmem>>, vector<1x128xf32>
    tpu.vector_store %arg4[%c2_332, %c0_333], %497 {strides = array<i32>} : memref<8x128xf32, #tpu.memory_space<vmem>>, vector<1x128xf32>,
    %c3_i32_334 = arith.constant 3 : i32
    %499 = arith.addi %0, %c3_i32_334 : i32
    %c8_i32_335 = arith.constant 8 : i32
    %500 = arith.muli %499, %c8_i32_335 : i32
    %501 = arith.addi %500, %c7_i32_318 : i32
    %502 = arith.index_cast %501 : i32 to index
    %503 = memref.load %arg1[%502] : memref<64xi32, #tpu.memory_space<smem>>
    %504 = arith.index_cast %503 : i32 to index
    %c0_336 = arith.constant 0 : index
    %505 = vector.load %arg2[%504, %c0_336] : memref<32x128xf32, #tpu.memory_space<vmem>>, vector<1x128xf32>
    %c3_337 = arith.constant 3 : index
    %c0_338 = arith.constant 0 : index
    %506 = vector.load %arg4[%c3_337, %c0_338] : memref<8x128xf32, #tpu.memory_space<vmem>>, vector<1x128xf32>
    tpu.vector_store %arg4[%c3_337, %c0_338], %505 {strides = array<i32>} : memref<8x128xf32, #tpu.memory_space<vmem>>, vector<1x128xf32>,
    %c4_i32_339 = arith.constant 4 : i32
    %507 = arith.addi %0, %c4_i32_339 : i32
    %c8_i32_340 = arith.constant 8 : i32
    %508 = arith.muli %507, %c8_i32_340 : i32
    %509 = arith.addi %508, %c7_i32_318 : i32
    %510 = arith.index_cast %509 : i32 to index
    %511 = memref.load %arg1[%510] : memref<64xi32, #tpu.memory_space<smem>>
    %512 = arith.index_cast %511 : i32 to index
    %c0_341 = arith.constant 0 : index
    %513 = vector.load %arg2[%512, %c0_341] : memref<32x128xf32, #tpu.memory_space<vmem>>, vector<1x128xf32>
    %c4_342 = arith.constant 4 : index
    %c0_343 = arith.constant 0 : index
    %514 = vector.load %arg4[%c4_342, %c0_343] : memref<8x128xf32, #tpu.memory_space<vmem>>, vector<1x128xf32>
    tpu.vector_store %arg4[%c4_342, %c0_343], %513 {strides = array<i32>} : memref<8x128xf32, #tpu.memory_space<vmem>>, vector<1x128xf32>,
    %c5_i32_344 = arith.constant 5 : i32
    %515 = arith.addi %0, %c5_i32_344 : i32
    %c8_i32_345 = arith.constant 8 : i32
    %516 = arith.muli %515, %c8_i32_345 : i32
    %517 = arith.addi %516, %c7_i32_318 : i32
    %518 = arith.index_cast %517 : i32 to index
    %519 = memref.load %arg1[%518] : memref<64xi32, #tpu.memory_space<smem>>
    %520 = arith.index_cast %519 : i32 to index
    %c0_346 = arith.constant 0 : index
    %521 = vector.load %arg2[%520, %c0_346] : memref<32x128xf32, #tpu.memory_space<vmem>>, vector<1x128xf32>
    %c5_347 = arith.constant 5 : index
    %c0_348 = arith.constant 0 : index
    %522 = vector.load %arg4[%c5_347, %c0_348] : memref<8x128xf32, #tpu.memory_space<vmem>>, vector<1x128xf32>
    tpu.vector_store %arg4[%c5_347, %c0_348], %521 {strides = array<i32>} : memref<8x128xf32, #tpu.memory_space<vmem>>, vector<1x128xf32>,
    %c6_i32_349 = arith.constant 6 : i32
    %523 = arith.addi %0, %c6_i32_349 : i32
    %c8_i32_350 = arith.constant 8 : i32
    %524 = arith.muli %523, %c8_i32_350 : i32
    %525 = arith.addi %524, %c7_i32_318 : i32
    %526 = arith.index_cast %525 : i32 to index
    %527 = memref.load %arg1[%526] : memref<64xi32, #tpu.memory_space<smem>>
    %528 = arith.index_cast %527 : i32 to index
    %c0_351 = arith.constant 0 : index
    %529 = vector.load %arg2[%528, %c0_351] : memref<32x128xf32, #tpu.memory_space<vmem>>, vector<1x128xf32>
    %c6_352 = arith.constant 6 : index
    %c0_353 = arith.constant 0 : index
    %530 = vector.load %arg4[%c6_352, %c0_353] : memref<8x128xf32, #tpu.memory_space<vmem>>, vector<1x128xf32>
    tpu.vector_store %arg4[%c6_352, %c0_353], %529 {strides = array<i32>} : memref<8x128xf32, #tpu.memory_space<vmem>>, vector<1x128xf32>,
    %c7_i32_354 = arith.constant 7 : i32
    %531 = arith.addi %0, %c7_i32_354 : i32
    %c8_i32_355 = arith.constant 8 : i32
    %532 = arith.muli %531, %c8_i32_355 : i32
    %533 = arith.addi %532, %c7_i32_318 : i32
    %534 = arith.index_cast %533 : i32 to index
    %535 = memref.load %arg1[%534] : memref<64xi32, #tpu.memory_space<smem>>
    %536 = arith.index_cast %535 : i32 to index
    %c0_356 = arith.constant 0 : index
    %537 = vector.load %arg2[%536, %c0_356] : memref<32x128xf32, #tpu.memory_space<vmem>>, vector<1x128xf32>
    %c7_357 = arith.constant 7 : index
    %c0_358 = arith.constant 0 : index
    %538 = vector.load %arg4[%c7_357, %c0_358] : memref<8x128xf32, #tpu.memory_space<vmem>>, vector<1x128xf32>
    tpu.vector_store %arg4[%c7_357, %c0_358], %537 {strides = array<i32>} : memref<8x128xf32, #tpu.memory_space<vmem>>, vector<1x128xf32>,
    %c0_359 = arith.constant 0 : index
    %c0_360 = arith.constant 0 : index
    %539 = vector.load %arg3[%c0_359, %c0_360] : memref<8x128xf32, #tpu.memory_space<vmem>>, vector<8x128xf32>
    %c0_361 = arith.constant 0 : index
    %c0_362 = arith.constant 0 : index
    %540 = vector.load %arg4[%c0_361, %c0_362] : memref<8x128xf32, #tpu.memory_space<vmem>>, vector<8x128xf32>
    %541 = arith.maximumf %539, %540 : vector<8x128xf32>
    %c0_363 = arith.constant 0 : index
    %c0_364 = arith.constant 0 : index
    %542 = vector.load %arg3[%c0_363, %c0_364] : memref<8x128xf32, #tpu.memory_space<vmem>>, vector<8x128xf32>
    tpu.vector_store %arg3[%c0_363, %c0_364], %541 {strides = array<i32>} : memref<8x128xf32, #tpu.memory_space<vmem>>, vector<8x128xf32>,
    %c7_i32_365 = arith.constant 7 : i32
    return
  }
  func.func @transform_0(%arg0: i32, %arg1: memref<64xi32, #tpu.memory_space<smem>>) -> (i32, i32) {
    %c0_i32 = arith.constant 0 : i32
    %c0_i32_0 = arith.constant 0 : i32
    %c0_i32_1 = arith.constant 0 : i32
    return %c0_i32, %c0_i32_0 : i32, i32
  }
  func.func @transform_1(%arg0: i32, %arg1: memref<64xi32, #tpu.memory_space<smem>>) -> (i32, i32) {
    %c0_i32 = arith.constant 0 : i32
    %c0_i32_0 = arith.constant 0 : i32
    return %arg0, %c0_i32 : i32, i32
  }
}

</mosaic_0001>

<llo_original>
// kernel: tpu_custom_call.1
$region0: #{tpu_custom_call.1}
  #allocation0 [shape = 'u32[]', space=smem, size = 0x4, offset = 0x4, fixed_abs, tag = 'smem constant byte address 0x4 - core index']
  #allocation1 [shape = 'u32[144,128]{1,0:T(1,128)}', space=vmem, size = 0x12000, scoped, tag = 'internal scratch']
  #allocation2 [shape = 'f32[8,128]{1,0:T(8,128)}', space=vmem, size = 0x1000, scoped, tag = 'scratch operand']
  #allocation3 [shape = 's32[1]{0}', space=sflag, size = 0x4, scoped, tag = 'scoped memory for tpu_custom_call.1']
  #allocation4 [shape = 'u8[512]{0}', space=smem, size = 0x200, scoped, tag = 'prefetched SMEM operand 0']
  %s0 = inlined_call_operand.hbm [shape: s32[64], index: 0, kind: input, shape index: {}]
  %s1 = inlined_call_operand.hbm [shape: f32[32,128], index: 1, kind: input, shape index: {}]
  %s2 = inlined_call_operand.hbm [shape: f32[8,128], index: 2, kind: output, shape index: {}]
  %s3 = sld [smem:[#allocation0]]
  $region18: #{tpu_custom_call.1} parent=0
    _
  %s5 = ssub.s32 1, %s3
  %s6 = scalar_select 0, %s5, %s3
  %8 = dma.hbm_to_smem %s0, 16, [#allocation4], [#allocation3]
  %9 = dma.done [#allocation3], 16
  %10 = sfence
  $region1: #{tpu_custom_call.1} parent=0
    #allocation5 [shape = 'u8[16384]{0}', space=vmem, size = 0x4000, scoped, tag = 'input window, operand 1, single buffered']
    #allocation6 [shape = 's32[1]{0}', space=sflag, size = 0x4, scoped, tag = 'scoped memory for tpu_custom_call.1']
    #allocation7 [shape = 's32[1]{0}', space=sflag, size = 0x4, scoped, tag = 'scoped memory for tpu_custom_call.1']
    #allocation8 [shape = 'u8[4096]{0}', space=vmem, size = 0x1000, scoped, tag = 'output window, operand 0, single buffered']
    %11 = vsyncpa [#allocation6], 0
    %12 = vsyncpa [#allocation7], 0
    // Predicated region
    $region2: #{tpu_custom_call.1} parent=1 // pred_check
      _
    $region3: #{tpu_custom_call.1} parent=1 // pred_check_branch
      %14 = sbr.rel (0) target = $region5
    $region4: #{tpu_custom_call.1} parent=1 // pred_region
      %s16 = ssub.s32 512, 512
      %17 = vsyncadd [#allocation6], %s16
      %s18 = sshll.u32 [#allocation5], 4
      %s19 = int_to_ptr.vmem [resolvable:$true] %s18
      %24 = dma.hbm_to_vmem [thread:$0]  %s1, 512, %s19, [#allocation6], 128, 128, 8
    $region5: #{tpu_custom_call.1} parent=1 // pred_fallthru
      _
    // Predicated region
    $region6: #{tpu_custom_call.1} parent=1 // pred_check
      _
    $region7: #{tpu_custom_call.1} parent=1 // pred_check_branch
      %26 = sbr.rel (0) target = $region9
    $region8: #{tpu_custom_call.1} parent=1 // pred_region
      %27 = dma.done [#allocation6], 512
    $region9: #{tpu_custom_call.1} parent=1 // pred_fallthru
      _
    %s28 = smul.u32 0, 8
    %s29 = smul.u32 0, 64
    %s30 = sld [smem:[#allocation4 + %s29]]
    %s31 = scalar_lea.vmem [#allocation5], %s30
    %v32 = vld [vmem:[%s31] sm:$0x1]
    %33 = vst [vmem:[#allocation2] sm:$0x1] %v32
    %s34 = sadd.s32 %s28, 1
    %s35 = smul.u32 %s34, 8
    %s36 = sld [smem:[#allocation4 + %s35]]
    %s37 = scalar_lea.vmem [#allocation5], %s36
    %v38 = vld [vmem:[%s37] sm:$0x1]
    %39 = vst [vmem:[#allocation2 + $0x1] sm:$0x1] %v38
    %s40 = sadd.s32 %s28, 2
    %s41 = smul.u32 %s40, 8
    %s42 = sld [smem:[#allocation4 + %s41]]
    %s43 = scalar_lea.vmem [#allocation5], %s42
    %v44 = vld [vmem:[%s43] sm:$0x1]
    %45 = vst [vmem:[#allocation2 + $0x2] sm:$0x1] %v44
    %s46 = sadd.s32 %s28, 3
    %s47 = smul.u32 %s46, 8
    %s48 = sld [smem:[#allocation4 + %s47]]
    %s49 = scalar_lea.vmem [#allocation5], %s48
    %v50 = vld [vmem:[%s49] sm:$0x1]
    %51 = vst [vmem:[#allocation2 + $0x3] sm:$0x1] %v50
    %s52 = sadd.s32 %s28, 4
    %s53 = smul.u32 %s52, 8
    %s54 = sld [smem:[#allocation4 + %s53]]
    %s55 = scalar_lea.vmem [#allocation5], %s54
    %v56 = vld [vmem:[%s55] sm:$0x1]
    %57 = vst [vmem:[#allocation2 + $0x4] sm:$0x1] %v56
    %s58 = sadd.s32 %s28, 5
    %s59 = smul.u32 %s58, 8
    %s60 = sld [smem:[#allocation4 + %s59]]
    %s61 = scalar_lea.vmem [#allocation5], %s60
    %v62 = vld [vmem:[%s61] sm:$0x1]
    %63 = vst [vmem:[#allocation2 + $0x5] sm:$0x1] %v62
    %s64 = sadd.s32 %s28, 6
    %s65 = smul.u32 %s64, 8
    %s66 = sld [smem:[#allocation4 + %s65]]
    %s67 = scalar_lea.vmem [#allocation5], %s66
    %v68 = vld [vmem:[%s67] sm:$0x1]
    %69 = vst [vmem:[#allocation2 + $0x6] sm:$0x1] %v68
    %s70 = sadd.s32 %s28, 7
    %s71 = smul.u32 %s70, 8
    %s72 = sld [smem:[#allocation4 + %s71]]
    %s73 = scalar_lea.vmem [#allocation5], %s72
    %v74 = vld [vmem:[%s73] sm:$0x1]
    %75 = vst [vmem:[#allocation2 + $0x7] sm:$0x1] %v74
    %v76 = vld [vmem:[#allocation2] sm:$0xff]
    %77 = vst [vmem:[#allocation8] sm:$0xff] %v76
    %s78 = sadd.s32 %s29, 1
    %s79 = sld [smem:[#allocation4 + %s78]]
    %s80 = scalar_lea.vmem [#allocation5], %s79
    %v81 = vld [vmem:[%s80] sm:$0x1]
    %82 = vst [vmem:[#allocation2] sm:$0x1] %v81
    %s83 = sadd.s32 %s35, 1
    %s84 = sld [smem:[#allocation4 + %s83]]
    %s85 = scalar_lea.vmem [#allocation5], %s84
    %v86 = vld [vmem:[%s85] sm:$0x1]
    %87 = vst [vmem:[#allocation2 + $0x1] sm:$0x1] %v86
    %s88 = sadd.s32 %s41, 1
    %s89 = sld [smem:[#allocation4 + %s88]]
    %s90 = scalar_lea.vmem [#allocation5], %s89
    %v91 = vld [vmem:[%s90] sm:$0x1]
    %92 = vst [vmem:[#allocation2 + $0x2] sm:$0x1] %v91
    %s93 = sadd.s32 %s47, 1
    %s94 = sld [smem:[#allocation4 + %s93]]
    %s95 = scalar_lea.vmem [#allocation5], %s94
    %v96 = vld [vmem:[%s95] sm:$0x1]
    %97 = vst [vmem:[#allocation2 + $0x3] sm:$0x1] %v96
    %s98 = sadd.s32 %s53, 1
    %s99 = sld [smem:[#allocation4 + %s98]]
    %s100 = scalar_lea.vmem [#allocation5], %s99
    %v101 = vld [vmem:[%s100] sm:$0x1]
    %102 = vst [vmem:[#allocation2 + $0x4] sm:$0x1] %v101
    %s103 = sadd.s32 %s59, 1
    %s104 = sld [smem:[#allocation4 + %s103]]
    %s105 = scalar_lea.vmem [#allocation5], %s104
    %v106 = vld [vmem:[%s105] sm:$0x1]
    %107 = vst [vmem:[#allocation2 + $0x5] sm:$0x1] %v106
    %s108 = sadd.s32 %s65, 1
    %s109 = sld [smem:[#allocation4 + %s108]]
    %s110 = scalar_lea.vmem [#allocation5], %s109
    %v111 = vld [vmem:[%s110] sm:$0x1]
    %112 = vst [vmem:[#allocation2 + $0x6] sm:$0x1] %v111
    %s113 = sadd.s32 %s71, 1
    %s114 = sld [smem:[#allocation4 + %s113]]
    %s115 = scalar_lea.vmem [#allocation5], %s114
    %v116 = vld [vmem:[%s115] sm:$0x1]
    %117 = vst [vmem:[#allocation2 + $0x7] sm:$0x1] %v116
    %v118 = vld [vmem:[#allocation8] sm:$0xff]
    %v119 = vld [vmem:[#allocation2] sm:$0xff]
    %v120 = vmax.f32 %v118, %v119
    %121 = vst [vmem:[#allocation8] sm:$0xff] %v120
    %s122 = sadd.s32 %s29, 2
    %s123 = sld [smem:[#allocation4 + %s122]]
    %s124 = scalar_lea.vmem [#allocation5], %s123
    %v125 = vld [vmem:[%s124] sm:$0x1]
    %126 = vst [vmem:[#allocation2] sm:$0x1] %v125
    %s127 = sadd.s32 %s35, 2
    %s128 = sld [smem:[#allocation4 + %s127]]
    %s129 = scalar_lea.vmem [#allocation5], %s128
    %v130 = vld [vmem:[%s129] sm:$0x1]
    %131 = vst [vmem:[#allocation2 + $0x1] sm:$0x1] %v130
    %s132 = sadd.s32 %s41, 2
    %s133 = sld [smem:[#allocation4 + %s132]]
    %s134 = scalar_lea.vmem [#allocation5], %s133
    %v135 = vld [vmem:[%s134] sm:$0x1]
    %136 = vst [vmem:[#allocation2 + $0x2] sm:$0x1] %v135
    %s137 = sadd.s32 %s47, 2
    %s138 = sld [smem:[#allocation4 + %s137]]
    %s139 = scalar_lea.vmem [#allocation5], %s138
    %v140 = vld [vmem:[%s139] sm:$0x1]
    %141 = vst [vmem:[#allocation2 + $0x3] sm:$0x1] %v140
    %s142 = sadd.s32 %s53, 2
    %s143 = sld [smem:[#allocation4 + %s142]]
    %s144 = scalar_lea.vmem [#allocation5], %s143
    %v145 = vld [vmem:[%s144] sm:$0x1]
    %146 = vst [vmem:[#allocation2 + $0x4] sm:$0x1] %v145
    %s147 = sadd.s32 %s59, 2
    %s148 = sld [smem:[#allocation4 + %s147]]
    %s149 = scalar_lea.vmem [#allocation5], %s148
    %v150 = vld [vmem:[%s149] sm:$0x1]
    %151 = vst [vmem:[#allocation2 + $0x5] sm:$0x1] %v150
    %s152 = sadd.s32 %s65, 2
    %s153 = sld [smem:[#allocation4 + %s152]]
    %s154 = scalar_lea.vmem [#allocation5], %s153
    %v155 = vld [vmem:[%s154] sm:$0x1]
    %156 = vst [vmem:[#allocation2 + $0x6] sm:$0x1] %v155
    %s157 = sadd.s32 %s71, 2
    %s158 = sld [smem:[#allocation4 + %s157]]
    %s159 = scalar_lea.vmem [#allocation5], %s158
    %v160 = vld [vmem:[%s159] sm:$0x1]
    %161 = vst [vmem:[#allocation2 + $0x7] sm:$0x1] %v160
    %v162 = vld [vmem:[#allocation8] sm:$0xff]
    %v163 = vld [vmem:[#allocation2] sm:$0xff]
    %v164 = vmax.f32 %v162, %v163
    %165 = vst [vmem:[#allocation8] sm:$0xff] %v164
    %s166 = sadd.s32 %s29, 3
    %s167 = sld [smem:[#allocation4 + %s166]]
    %s168 = scalar_lea.vmem [#allocation5], %s167
    %v169 = vld [vmem:[%s168] sm:$0x1]
    %170 = vst [vmem:[#allocation2] sm:$0x1] %v169
    %s171 = sadd.s32 %s35, 3
    %s172 = sld [smem:[#allocation4 + %s171]]
    %s173 = scalar_lea.vmem [#allocation5], %s172
    %v174 = vld [vmem:[%s173] sm:$0x1]
    %175 = vst [vmem:[#allocation2 + $0x1] sm:$0x1] %v174
    %s176 = sadd.s32 %s41, 3
    %s177 = sld [smem:[#allocation4 + %s176]]
    %s178 = scalar_lea.vmem [#allocation5], %s177
    %v179 = vld [vmem:[%s178] sm:$0x1]
    %180 = vst [vmem:[#allocation2 + $0x2] sm:$0x1] %v179
    %s181 = sadd.s32 %s47, 3
    %s182 = sld [smem:[#allocation4 + %s181]]
    %s183 = scalar_lea.vmem [#allocation5], %s182
    %v184 = vld [vmem:[%s183] sm:$0x1]
    %185 = vst [vmem:[#allocation2 + $0x3] sm:$0x1] %v184
    %s186 = sadd.s32 %s53, 3
    %s187 = sld [smem:[#allocation4 + %s186]]
    %s188 = scalar_lea.vmem [#allocation5], %s187
    %v189 = vld [vmem:[%s188] sm:$0x1]
    %190 = vst [vmem:[#allocation2 + $0x4] sm:$0x1] %v189
    %s191 = sadd.s32 %s59, 3
    %s192 = sld [smem:[#allocation4 + %s191]]
    %s193 = scalar_lea.vmem [#allocation5], %s192
    %v194 = vld [vmem:[%s193] sm:$0x1]
    %195 = vst [vmem:[#allocation2 + $0x5] sm:$0x1] %v194
    %s196 = sadd.s32 %s65, 3
    %s197 = sld [smem:[#allocation4 + %s196]]
    %s198 = scalar_lea.vmem [#allocation5], %s197
    %v199 = vld [vmem:[%s198] sm:$0x1]
    %200 = vst [vmem:[#allocation2 + $0x6] sm:$0x1] %v199
    %s201 = sadd.s32 %s71, 3
    %s202 = sld [smem:[#allocation4 + %s201]]
    %s203 = scalar_lea.vmem [#allocation5], %s202
    %v204 = vld [vmem:[%s203] sm:$0x1]
    %205 = vst [vmem:[#allocation2 + $0x7] sm:$0x1] %v204
    %v206 = vld [vmem:[#allocation8] sm:$0xff]
    %v207 = vld [vmem:[#allocation2] sm:$0xff]
    %v208 = vmax.f32 %v206, %v207
    %209 = vst [vmem:[#allocation8] sm:$0xff] %v208
    %s210 = sadd.s32 %s29, 4
    %s211 = sld [smem:[#allocation4 + %s210]]
    %s212 = scalar_lea.vmem [#allocation5], %s211
    %v213 = vld [vmem:[%s212] sm:$0x1]
    %214 = vst [vmem:[#allocation2] sm:$0x1] %v213
    %s215 = sadd.s32 %s35, 4
    %s216 = sld [smem:[#allocation4 + %s215]]
    %s217 = scalar_lea.vmem [#allocation5], %s216
    %v218 = vld [vmem:[%s217] sm:$0x1]
    %219 = vst [vmem:[#allocation2 + $0x1] sm:$0x1] %v218
    %s220 = sadd.s32 %s41, 4
    %s221 = sld [smem:[#allocation4 + %s220]]
    %s222 = scalar_lea.vmem [#allocation5], %s221
    %v223 = vld [vmem:[%s222] sm:$0x1]
    %224 = vst [vmem:[#allocation2 + $0x2] sm:$0x1] %v223
    %s225 = sadd.s32 %s47, 4
    %s226 = sld [smem:[#allocation4 + %s225]]
    %s227 = scalar_lea.vmem [#allocation5], %s226
    %v228 = vld [vmem:[%s227] sm:$0x1]
    %229 = vst [vmem:[#allocation2 + $0x3] sm:$0x1] %v228
    %s230 = sadd.s32 %s53, 4
    %s231 = sld [smem:[#allocation4 + %s230]]
    %s232 = scalar_lea.vmem [#allocation5], %s231
    %v233 = vld [vmem:[%s232] sm:$0x1]
    %234 = vst [vmem:[#allocation2 + $0x4] sm:$0x1] %v233
    %s235 = sadd.s32 %s59, 4
    %s236 = sld [smem:[#allocation4 + %s235]]
    %s237 = scalar_lea.vmem [#allocation5], %s236
    %v238 = vld [vmem:[%s237] sm:$0x1]
    %239 = vst [vmem:[#allocation2 + $0x5] sm:$0x1] %v238
    %s240 = sadd.s32 %s65, 4
    %s241 = sld [smem:[#allocation4 + %s240]]
    %s242 = scalar_lea.vmem [#allocation5], %s241
    %v243 = vld [vmem:[%s242] sm:$0x1]
    %244 = vst [vmem:[#allocation2 + $0x6] sm:$0x1] %v243
    %s245 = sadd.s32 %s71, 4
    %s246 = sld [smem:[#allocation4 + %s245]]
    %s247 = scalar_lea.vmem [#allocation5], %s246
    %v248 = vld [vmem:[%s247] sm:$0x1]
    %249 = vst [vmem:[#allocation2 + $0x7] sm:$0x1] %v248
    %v250 = vld [vmem:[#allocation8] sm:$0xff]
    %v251 = vld [vmem:[#allocation2] sm:$0xff]
    %v252 = vmax.f32 %v250, %v251
    %253 = vst [vmem:[#allocation8] sm:$0xff] %v252
    %s254 = sadd.s32 %s29, 5
    %s255 = sld [smem:[#allocation4 + %s254]]
    %s256 = scalar_lea.vmem [#allocation5], %s255
    %v257 = vld [vmem:[%s256] sm:$0x1]
    %258 = vst [vmem:[#allocation2] sm:$0x1] %v257
    %s259 = sadd.s32 %s35, 5
    %s260 = sld [smem:[#allocation4 + %s259]]
    %s261 = scalar_lea.vmem [#allocation5], %s260
    %v262 = vld [vmem:[%s261] sm:$0x1]
    %263 = vst [vmem:[#allocation2 + $0x1] sm:$0x1] %v262
    %s264 = sadd.s32 %s41, 5
    %s265 = sld [smem:[#allocation4 + %s264]]
    %s266 = scalar_lea.vmem [#allocation5], %s265
    %v267 = vld [vmem:[%s266] sm:$0x1]
    %268 = vst [vmem:[#allocation2 + $0x2] sm:$0x1] %v267
    %s269 = sadd.s32 %s47, 5
    %s270 = sld [smem:[#allocation4 + %s269]]
    %s271 = scalar_lea.vmem [#allocation5], %s270
    %v272 = vld [vmem:[%s271] sm:$0x1]
    %273 = vst [vmem:[#allocation2 + $0x3] sm:$0x1] %v272
    %s274 = sadd.s32 %s53, 5
    %s275 = sld [smem:[#allocation4 + %s274]]
    %s276 = scalar_lea.vmem [#allocation5], %s275
    %v277 = vld [vmem:[%s276] sm:$0x1]
    %278 = vst [vmem:[#allocation2 + $0x4] sm:$0x1] %v277
    %s279 = sadd.s32 %s59, 5
    %s280 = sld [smem:[#allocation4 + %s279]]
    %s281 = scalar_lea.vmem [#allocation5], %s280
    %v282 = vld [vmem:[%s281] sm:$0x1]
    %283 = vst [vmem:[#allocation2 + $0x5] sm:$0x1] %v282
    %s284 = sadd.s32 %s65, 5
    %s285 = sld [smem:[#allocation4 + %s284]]
    %s286 = scalar_lea.vmem [#allocation5], %s285
    %v287 = vld [vmem:[%s286] sm:$0x1]
    %288 = vst [vmem:[#allocation2 + $0x6] sm:$0x1] %v287
    %s289 = sadd.s32 %s71, 5
    %s290 = sld [smem:[#allocation4 + %s289]]
    %s291 = scalar_lea.vmem [#allocation5], %s290
    %v292 = vld [vmem:[%s291] sm:$0x1]
    %293 = vst [vmem:[#allocation2 + $0x7] sm:$0x1] %v292
    %v294 = vld [vmem:[#allocation8] sm:$0xff]
    %v295 = vld [vmem:[#allocation2] sm:$0xff]
    %v296 = vmax.f32 %v294, %v295
    %297 = vst [vmem:[#allocation8] sm:$0xff] %v296
    %s298 = sadd.s32 %s29, 6
    %s299 = sld [smem:[#allocation4 + %s298]]
    %s300 = scalar_lea.vmem [#allocation5], %s299
    %v301 = vld [vmem:[%s300] sm:$0x1]
    %302 = vst [vmem:[#allocation2] sm:$0x1] %v301
    %s303 = sadd.s32 %s35, 6
    %s304 = sld [smem:[#allocation4 + %s303]]
    %s305 = scalar_lea.vmem [#allocation5], %s304
    %v306 = vld [vmem:[%s305] sm:$0x1]
    %307 = vst [vmem:[#allocation2 + $0x1] sm:$0x1] %v306
    %s308 = sadd.s32 %s41, 6
    %s309 = sld [smem:[#allocation4 + %s308]]
    %s310 = scalar_lea.vmem [#allocation5], %s309
    %v311 = vld [vmem:[%s310] sm:$0x1]
    %312 = vst [vmem:[#allocation2 + $0x2] sm:$0x1] %v311
    %s313 = sadd.s32 %s47, 6
    %s314 = sld [smem:[#allocation4 + %s313]]
    %s315 = scalar_lea.vmem [#allocation5], %s314
    %v316 = vld [vmem:[%s315] sm:$0x1]
    %317 = vst [vmem:[#allocation2 + $0x3] sm:$0x1] %v316
    %s318 = sadd.s32 %s53, 6
    %s319 = sld [smem:[#allocation4 + %s318]]
    %s320 = scalar_lea.vmem [#allocation5], %s319
    %v321 = vld [vmem:[%s320] sm:$0x1]
    %322 = vst [vmem:[#allocation2 + $0x4] sm:$0x1] %v321
    %s323 = sadd.s32 %s59, 6
    %s324 = sld [smem:[#allocation4 + %s323]]
    %s325 = scalar_lea.vmem [#allocation5], %s324
    %v326 = vld [vmem:[%s325] sm:$0x1]
    %327 = vst [vmem:[#allocation2 + $0x5] sm:$0x1] %v326
    %s328 = sadd.s32 %s65, 6
    %s329 = sld [smem:[#allocation4 + %s328]]
    %s330 = scalar_lea.vmem [#allocation5], %s329
    %v331 = vld [vmem:[%s330] sm:$0x1]
    %332 = vst [vmem:[#allocation2 + $0x6] sm:$0x1] %v331
    %s333 = sadd.s32 %s71, 6
    %s334 = sld [smem:[#allocation4 + %s333]]
    %s335 = scalar_lea.vmem [#allocation5], %s334
    %v336 = vld [vmem:[%s335] sm:$0x1]
    %337 = vst [vmem:[#allocation2 + $0x7] sm:$0x1] %v336
    %v338 = vld [vmem:[#allocation8] sm:$0xff]
    %v339 = vld [vmem:[#allocation2] sm:$0xff]
    %v340 = vmax.f32 %v338, %v339
    %341 = vst [vmem:[#allocation8] sm:$0xff] %v340
    %s342 = sadd.s32 %s29, 7
    %s343 = sld [smem:[#allocation4 + %s342]]
    %s344 = scalar_lea.vmem [#allocation5], %s343
    %v345 = vld [vmem:[%s344] sm:$0x1]
    %346 = vst [vmem:[#allocation2] sm:$0x1] %v345
    %s347 = sadd.s32 %s35, 7
    %s348 = sld [smem:[#allocation4 + %s347]]
    %s349 = scalar_lea.vmem [#allocation5], %s348
    %v350 = vld [vmem:[%s349] sm:$0x1]
    %351 = vst [vmem:[#allocation2 + $0x1] sm:$0x1] %v350
    %s352 = sadd.s32 %s41, 7
    %s353 = sld [smem:[#allocation4 + %s352]]
    %s354 = scalar_lea.vmem [#allocation5], %s353
    %v355 = vld [vmem:[%s354] sm:$0x1]
    %356 = vst [vmem:[#allocation2 + $0x2] sm:$0x1] %v355
    %s357 = sadd.s32 %s47, 7
    %s358 = sld [smem:[#allocation4 + %s357]]
    %s359 = scalar_lea.vmem [#allocation5], %s358
    %v360 = vld [vmem:[%s359] sm:$0x1]
    %361 = vst [vmem:[#allocation2 + $0x3] sm:$0x1] %v360
    %s362 = sadd.s32 %s53, 7
    %s363 = sld [smem:[#allocation4 + %s362]]
    %s364 = scalar_lea.vmem [#allocation5], %s363
    %v365 = vld [vmem:[%s364] sm:$0x1]
    %366 = vst [vmem:[#allocation2 + $0x4] sm:$0x1] %v365
    %s367 = sadd.s32 %s59, 7
    %s368 = sld [smem:[#allocation4 + %s367]]
    %s369 = scalar_lea.vmem [#allocation5], %s368
    %v370 = vld [vmem:[%s369] sm:$0x1]
    %371 = vst [vmem:[#allocation2 + $0x5] sm:$0x1] %v370
    %s372 = sadd.s32 %s65, 7
    %s373 = sld [smem:[#allocation4 + %s372]]
    %s374 = scalar_lea.vmem [#allocation5], %s373
    %v375 = vld [vmem:[%s374] sm:$0x1]
    %376 = vst [vmem:[#allocation2 + $0x6] sm:$0x1] %v375
    %s377 = sadd.s32 %s71, 7
    %s378 = sld [smem:[#allocation4 + %s377]]
    %s379 = scalar_lea.vmem [#allocation5], %s378
    %v380 = vld [vmem:[%s379] sm:$0x1]
    %381 = vst [vmem:[#allocation2 + $0x7] sm:$0x1] %v380
    %v382 = vld [vmem:[#allocation8] sm:$0xff]
    %v383 = vld [vmem:[#allocation2] sm:$0xff]
    %v384 = vmax.f32 %v382, %v383
    %385 = vst [vmem:[#allocation8] sm:$0xff] %v384
    // Predicated region
    $region10: #{tpu_custom_call.1} parent=1 // pred_check
      _
    $region11: #{tpu_custom_call.1} parent=1 // pred_check_branch
      %387 = sbr.rel (0) target = $region13
    $region12: #{tpu_custom_call.1} parent=1 // pred_region
      %s389 = ssub.s32 128, 128
      %390 = vsyncadd [#allocation7], %s389
      %s392 = sshll.u32 [#allocation8], 4
      %s393 = int_to_ptr.vmem [resolvable:$true] %s392
      %395 = dma.vmem_to_hbm [thread:$0]  %s393, 128, %s2, [#allocation7]
    $region13: #{tpu_custom_call.1} parent=1 // pred_fallthru
      _
    // Predicated region
    $region14: #{tpu_custom_call.1} parent=1 // pred_check
      _
    $region15: #{tpu_custom_call.1} parent=1 // pred_check_branch
      %397 = sbr.rel (0) target = $region17
    $region16: #{tpu_custom_call.1} parent=1 // pred_region
      %398 = dma.done [#allocation7], 128
    $region17: #{tpu_custom_call.1} parent=1 // pred_fallthru
      _
    %399 = vsyncpa [#allocation6], 1
    %400 = vsyncpa [#allocation7], 1

</llo_original>
